<compile_context>
chip_gen: v7x
topology: tpu7x:2x2x1
jax: 0.10.0
libtpu: 0.0.40
codegen_flags: <defaults>
</compile_context>

<pallas_src>
import functools
import math

import jax
import jax.numpy as jnp
from jax import lax
from jax.experimental import pallas as pl
from jax.experimental.pallas import tpu as pltpu


def _layer_norm(x, gamma, beta, *, eps, d):
    # Module's custom LayerNorm: gamma*(x-mean)/(std+eps)+beta with unbiased (N-1) std.
    mean = jnp.sum(x, axis=-1, keepdims=True) * (1.0 / d)
    xc = x - mean
    var = jnp.sum(xc * xc, axis=-1, keepdims=True) * (1.0 / (d - 1))
    inv = pl.reciprocal(jnp.sqrt(var) + eps, approx=False)
    return xc * inv * gamma + beta


def _encoder_layer_kernel(x_ref, wqkv_ref, w1_ref, b1_ref, w2_ref, b2_ref,
                          g1_ref, be1_ref, g2_ref, be2_ref,
                          o_ref, attn_ref, *, n_heads, d_model, eps, scale):
    f32 = jnp.float32
    bf16 = jnp.bfloat16
    dh = d_model // n_heads
    inv_scale = 1.0 / scale

    x = x_ref[0]                                              # (S, D) f32 activations

    # Fused Q|K|V projection: one wide MXU op, bf16 operands, f32 accumulation.
    qkv = jnp.dot(x.astype(bf16), wqkv_ref[...], preferred_element_type=f32)   # (S, 3D)
    qkv_b = qkv.astype(bf16)                                  # rounded once for the MXU

    # Per-head attention.  n_heads is small & static -> unrolled; each head's output is
    # stored straight into VMEM scratch, so its scores/probs are dead before the next head.
    # NOTE: spec scales by sqrt(d_model) (Attention gets d_key == dimension), not sqrt(d_head).
    for h in range(n_heads):
        lo = h * dh
        qh = qkv_b[:, lo:lo + dh]
        kh = qkv_b[:, d_model + lo:d_model + lo + dh]
        vh = qkv_b[:, 2 * d_model + lo:2 * d_model + lo + dh]
        # scores = qh @ kh.T without materializing a transpose.
        s = lax.dot_general(qh, kh, (((1,), (1,)), ((), ())),
                            preferred_element_type=f32) * inv_scale
        m = jnp.max(s, axis=-1, keepdims=True)
        e = jnp.exp(s - m)
        p = e * pl.reciprocal(jnp.sum(e, axis=-1, keepdims=True), approx=True)
        attn_ref[:, lo:lo + dh] = jnp.dot(p.astype(bf16), vh,
                                          preferred_element_type=f32)

    # Residual + LayerNorm 1.
    y1 = _layer_norm(x + attn_ref[...], g1_ref[...], be1_ref[...], eps=eps, d=d_model)

    # Feed-forward: relu(y1 @ W1^T + b1) @ W2^T + b2  (bf16 MXU inputs, f32 accum + bias).
    z = jnp.dot(y1.astype(bf16), w1_ref[...], preferred_element_type=f32)
    z = jnp.maximum(z + b1_ref[...], 0.0)
    ffn = jnp.dot(z.astype(bf16), w2_ref[...], preferred_element_type=f32)
    ffn = ffn + b2_ref[...]

    # Residual + LayerNorm 2.
    y2 = _layer_norm(y1 + ffn, g2_ref[...], be2_ref[...], eps=eps, d=d_model)
    o_ref[0] = y2.astype(o_ref.dtype)


def transformer_encoder_layer(x, params, *, n_heads, eps=1e-6):
    """x: (B, S, D).  params hold torch-layout weights (out_features, in_features)."""
    B, S, D = x.shape
    H = params["w1"].shape[0]
    assert D % n_heads == 0
    scale = math.sqrt(D)

    f32, bf16 = jnp.float32, jnp.bfloat16
    # Pre-transpose + pre-cast weights once; fuse Q/K/V into one (D, 3D) matmul operand.
    wqkv_t = jnp.concatenate(
        [params["wq"].T, params["wk"].T, params["wv"].T], axis=1).astype(bf16)  # (D, 3D)
    w1_t = params["w1"].T.astype(bf16)                     # (D, H)
    w2_t = params["w2"].T.astype(bf16)                     # (H, D)
    b1 = params["b1"].reshape(1, H).astype(f32)
    b2 = params["b2"].reshape(1, D).astype(f32)
    g1 = params["gamma1"].reshape(1, D).astype(f32)
    be1 = params["beta1"].reshape(1, D).astype(f32)
    g2 = params["gamma2"].reshape(1, D).astype(f32)
    be2 = params["beta2"].reshape(1, D).astype(f32)

    kernel = functools.partial(_encoder_layer_kernel, n_heads=n_heads,
                               d_model=D, eps=eps, scale=scale)

    def const_spec(shape):
        # Weight/bias blocks: full array, same block every grid step (stay VMEM-resident).
        return pl.BlockSpec(shape, lambda b: (0, 0))

    # Generation-aware VMEM budget: double-buffered weights + x/out blocks + scratch,
    # with headroom, capped at the v7x 64 MiB per-core budget.
    weight_args = (wqkv_t, w1_t, b1, w2_t, b2, g1, be1, g2, be2)
    weight_bytes = sum(int(a.size) * a.dtype.itemsize for a in weight_args)
    block_bytes = S * D * 4                                  # f32 x / out block per step
    scratch_bytes = S * D * 4
    vmem_needed = 2 * weight_bytes + 2 * 2 * block_bytes + scratch_bytes
    vmem_limit = int(min(64 << 20, max(16 << 20, 4 * vmem_needed)))

    out = pl.pallas_call(
        kernel,
        out_shape=jax.ShapeDtypeStruct((B, S, D), x.dtype),
        grid_spec=pltpu.PrefetchScalarGridSpec(
            num_scalar_prefetch=0,
            grid=(B,),
            in_specs=[
                pl.BlockSpec((1, S, D), lambda b: (b, 0, 0)),   # x
                const_spec((D, 3 * D)),                         # fused [Wq|Wk|Wv]^T (bf16)
                const_spec((D, H)), const_spec((1, H)),         # W1^T (bf16), b1
                const_spec((H, D)), const_spec((1, D)),         # W2^T (bf16), b2
                const_spec((1, D)), const_spec((1, D)),         # gamma1, beta1
                const_spec((1, D)), const_spec((1, D)),         # gamma2, beta2
            ],
            out_specs=pl.BlockSpec((1, S, D), lambda b: (b, 0, 0)),
            scratch_shapes=[pltpu.VMEM((S, D), jnp.float32)],   # per-step attention output
        ),
        compiler_params=pltpu.CompilerParams(
            dimension_semantics=("parallel",),
            vmem_limit_bytes=vmem_limit,
        ),
    )(x, wqkv_t, w1_t, b1, w2_t, b2, g1, be1, g2, be2)
    return out


def _reference(x, p, *, n_heads, eps):
    """Pure-JAX, full-f32 replica of the PyTorch module's forward (eval mode)."""
    hp = lax.Precision.HIGHEST
    B, S, D = x.shape
    dh = D // n_heads
    scale = math.sqrt(D)

    def ln(h, g, b):
        mean = jnp.mean(h, -1, keepdims=True)
        std = jnp.sqrt(jnp.sum((h - mean) ** 2, -1, keepdims=True) / (D - 1))
        return g * (h - mean) / (std + eps) + b

    q = jnp.einsum("bsd,ed->bse", x, p["wq"], precision=hp)
    k = jnp.einsum("bsd,ed->bse", x, p["wk"], precision=hp)
    v = jnp.einsum("bsd,ed->bse", x, p["wv"], precision=hp)

    def split(t):
        return t.reshape(B, S, n_heads, dh).transpose(0, 2, 1, 3)   # (B,H,S,dh)

    qh, kh, vh = split(q), split(k), split(v)
    scores = jnp.einsum("bhqd,bhkd->bhqk", qh, kh, precision=hp) / scale
    pattn = jax.nn.softmax(scores, axis=-1)
    attn = jnp.einsum("bhqk,bhkd->bhqd", pattn, vh, precision=hp)
    attn = attn.transpose(0, 2, 1, 3).reshape(B, S, D)

    y1 = ln(x + attn, p["gamma1"], p["beta1"])
    z = jax.nn.relu(jnp.einsum("bsd,hd->bsh", y1, p["w1"], precision=hp) + p["b1"])
    ffn = jnp.einsum("bsh,dh->bsd", z, p["w2"], precision=hp) + p["b2"]
    return ln(y1 + ffn, p["gamma2"], p["beta2"])


if __name__ == "__main__":
    d_model, n_heads, hidden = 32, 4, 64
    batch, seq = 2, 8
    eps = 1e-6

    key = jax.random.PRNGKey(0)
    keys = jax.random.split(key, 8)
    x = jax.random.normal(keys[0], (batch, seq, d_model), dtype=jnp.float32)

    def init(k, shape, s=0.1):
        return (s * jax.random.normal(k, shape)).astype(jnp.float32)

    params = {
        "wq": init(keys[1], (d_model, d_model)),
        "wk": init(keys[2], (d_model, d_model)),
        "wv": init(keys[3], (d_model, d_model)),
        "w1": init(keys[4], (hidden, d_model)),
        "b1": init(keys[5], (hidden,)),
        "w2": init(keys[6], (d_model, hidden)),
        "b2": init(keys[7], (d_model,)),
        "gamma1": jnp.ones((d_model,), jnp.float32),
        "beta1": jnp.zeros((d_model,), jnp.float32),
        "gamma2": jnp.ones((d_model,), jnp.float32),
        "beta2": jnp.zeros((d_model,), jnp.float32),
    }

    out = transformer_encoder_layer(x, params, n_heads=n_heads, eps=eps)
    jax.block_until_ready(out)

    ref = _reference(x, params, n_heads=n_heads, eps=eps)
    assert out.shape == x.shape
    max_err = float(jnp.max(jnp.abs(out - ref)))
    # Kernel runs the MXU with bf16 operands (f32 accumulation) per the perf review; the
    # reference is full-f32 HIGHEST precision, so the tolerance reflects bf16 input rounding.
    assert jnp.allclose(out, ref, atol=5e-2, rtol=5e-2), f"max abs err = {max_err}"

    print("KERNEL_OK")
</pallas_src>

<mosaic_0001>
module attributes {stable_mosaic.version = 11 : i64} {
  func.func @_encoder_layer_kernel(%arg0: i32, %arg1: memref<1x8x32xf32, #tpu.memory_space<vmem>>, %arg2: memref<32x96xbf16, #tpu.memory_space<vmem>>, %arg3: memref<32x64xbf16, #tpu.memory_space<vmem>>, %arg4: memref<1x64xf32, #tpu.memory_space<vmem>>, %arg5: memref<64x32xbf16, #tpu.memory_space<vmem>>, %arg6: memref<1x32xf32, #tpu.memory_space<vmem>>, %arg7: memref<1x32xf32, #tpu.memory_space<vmem>>, %arg8: memref<1x32xf32, #tpu.memory_space<vmem>>, %arg9: memref<1x32xf32, #tpu.memory_space<vmem>>, %arg10: memref<1x32xf32, #tpu.memory_space<vmem>>, %arg11: memref<1x8x32xf32, #tpu.memory_space<vmem>>, %arg12: memref<8x32xf32, #tpu.memory_space<vmem>>) attributes {dimension_semantics = [#tpu.dimension_semantics<parallel>], iteration_bounds = array<i64: 2>, scalar_prefetch = 0 : i64, scratch_operands = 1 : i64, tpu.core_type = #tpu.core_type<tc>, window_params = [{transform_indices = @transform_0, window_bounds = array<i64: 1, 8, 32>}, {pipeline_mode = #tpu.pipeline_mode<synchronous>, transform_indices = @transform_1, window_bounds = array<i64: 32, 96>}, {pipeline_mode = #tpu.pipeline_mode<synchronous>, transform_indices = @transform_2, window_bounds = array<i64: 32, 64>}, {pipeline_mode = #tpu.pipeline_mode<synchronous>, transform_indices = @transform_3, window_bounds = array<i64: 1, 64>}, {pipeline_mode = #tpu.pipeline_mode<synchronous>, transform_indices = @transform_4, window_bounds = array<i64: 64, 32>}, {pipeline_mode = #tpu.pipeline_mode<synchronous>, transform_indices = @transform_5, window_bounds = array<i64: 1, 32>}, {pipeline_mode = #tpu.pipeline_mode<synchronous>, transform_indices = @transform_6, window_bounds = array<i64: 1, 32>}, {pipeline_mode = #tpu.pipeline_mode<synchronous>, transform_indices = @transform_7, window_bounds = array<i64: 1, 32>}, {pipeline_mode = #tpu.pipeline_mode<synchronous>, transform_indices = @transform_8, window_bounds = array<i64: 1, 32>}, {pipeline_mode = #tpu.pipeline_mode<synchronous>, transform_indices = @transform_9, window_bounds = array<i64: 1, 32>}, {transform_indices = @transform_10, window_bounds = array<i64: 1, 8, 32>}]} {
    %c0 = arith.constant 0 : index
    %c0_0 = arith.constant 0 : index
    %c0_1 = arith.constant 0 : index
    %0 = vector.load %arg1[%c0, %c0_0, %c0_1] : memref<1x8x32xf32, #tpu.memory_space<vmem>>, vector<1x8x32xf32>
    %1 = vector.shape_cast %0 : vector<1x8x32xf32> to vector<8x32xf32>
    %2 = arith.truncf %1 : vector<8x32xf32> to vector<8x32xbf16>
    %c0_2 = arith.constant 0 : index
    %c0_3 = arith.constant 0 : index
    %3 = vector.load %arg2[%c0_2, %c0_3] : memref<32x96xbf16, #tpu.memory_space<vmem>>, vector<32x96xbf16>
    %cst = arith.constant dense<0.000000e+00> : vector<8x96xf32>
    %4 = tpu.matmul %2, %3, %cst {dimension_numbers = #tpu.dot_dimension_numbers<[1], [0], [0], [1], [0, 0, 1, 1], [], []>} : vector<8x32xbf16>, vector<32x96xbf16>, vector<8x96xf32> -> vector<8x96xf32>
    %5 = arith.truncf %4 : vector<8x96xf32> to vector<8x96xbf16>
    %6 = vector.extract_strided_slice %5 {offsets = [0, 0], sizes = [8, 8], strides = [1, 1]} : vector<8x96xbf16> to vector<8x8xbf16>
    %7 = vector.extract_strided_slice %5 {offsets = [0, 32], sizes = [8, 8], strides = [1, 1]} : vector<8x96xbf16> to vector<8x8xbf16>
    %8 = vector.extract_strided_slice %5 {offsets = [0, 64], sizes = [8, 8], strides = [1, 1]} : vector<8x96xbf16> to vector<8x8xbf16>
    %cst_4 = arith.constant dense<0.000000e+00> : vector<8x8xf32>
    %9 = tpu.matmul %6, %7, %cst_4 {dimension_numbers = #tpu.dot_dimension_numbers<[1], [1], [0], [0], [0, 0, 1, 0], [], []>} : vector<8x8xbf16>, vector<8x8xbf16>, vector<8x8xf32> -> vector<8x8xf32>
    %cst_5 = arith.constant 0.176776692 : f32
    %10 = vector.broadcast %cst_5 : f32 to vector<8x8xf32>
    %11 = arith.mulf %9, %10 : vector<8x8xf32>
    %cst_6 = arith.constant dense<0xFF800000> : vector<8xf32>
    %12 = vector.multi_reduction <maximumf>, %11, %cst_6 [1] : vector<8x8xf32> to vector<8xf32>
    %13 = vector.shape_cast %12 : vector<8xf32> to vector<8x1xf32>
    %14 = vector.broadcast %13 : vector<8x1xf32> to vector<8x8xf32>
    %15 = arith.subf %11, %14 : vector<8x8xf32>
    %16 = math.exp %15 : vector<8x8xf32>
    %cst_7 = arith.constant dense<0.000000e+00> : vector<8xf32>
    %17 = vector.multi_reduction <add>, %16, %cst_7 [1] : vector<8x8xf32> to vector<8xf32>
    %18 = vector.shape_cast %17 : vector<8xf32> to vector<8x1xf32>
    %19 = tpu.reciprocal %18 {approx = true} : vector<8x1xf32> -> vector<8x1xf32>
    %20 = vector.broadcast %19 : vector<8x1xf32> to vector<8x8xf32>
    %21 = arith.mulf %16, %20 : vector<8x8xf32>
    %22 = arith.truncf %21 : vector<8x8xf32> to vector<8x8xbf16>
    %cst_8 = arith.constant dense<0.000000e+00> : vector<8x8xf32>
    %23 = tpu.matmul %22, %8, %cst_8 {dimension_numbers = #tpu.dot_dimension_numbers<[1], [0], [0], [1], [0, 0, 1, 1], [], []>} : vector<8x8xbf16>, vector<8x8xbf16>, vector<8x8xf32> -> vector<8x8xf32>
    %c0_9 = arith.constant 0 : index
    %c0_10 = arith.constant 0 : index
    %24 = vector.load %arg12[%c0_9, %c0_10] : memref<8x32xf32, #tpu.memory_space<vmem>>, vector<8x8xf32>
    tpu.vector_store %arg12[%c0_9, %c0_10], %23 {strides = array<i32>} : memref<8x32xf32, #tpu.memory_space<vmem>>, vector<8x8xf32>,
    %25 = vector.extract_strided_slice %5 {offsets = [0, 8], sizes = [8, 8], strides = [1, 1]} : vector<8x96xbf16> to vector<8x8xbf16>
    %26 = vector.extract_strided_slice %5 {offsets = [0, 40], sizes = [8, 8], strides = [1, 1]} : vector<8x96xbf16> to vector<8x8xbf16>
    %27 = vector.extract_strided_slice %5 {offsets = [0, 72], sizes = [8, 8], strides = [1, 1]} : vector<8x96xbf16> to vector<8x8xbf16>
    %cst_11 = arith.constant dense<0.000000e+00> : vector<8x8xf32>
    %28 = tpu.matmul %25, %26, %cst_11 {dimension_numbers = #tpu.dot_dimension_numbers<[1], [1], [0], [0], [0, 0, 1, 0], [], []>} : vector<8x8xbf16>, vector<8x8xbf16>, vector<8x8xf32> -> vector<8x8xf32>
    %cst_12 = arith.constant 0.176776692 : f32
    %29 = vector.broadcast %cst_12 : f32 to vector<8x8xf32>
    %30 = arith.mulf %28, %29 : vector<8x8xf32>
    %cst_13 = arith.constant dense<0xFF800000> : vector<8xf32>
    %31 = vector.multi_reduction <maximumf>, %30, %cst_13 [1] : vector<8x8xf32> to vector<8xf32>
    %32 = vector.shape_cast %31 : vector<8xf32> to vector<8x1xf32>
    %33 = vector.broadcast %32 : vector<8x1xf32> to vector<8x8xf32>
    %34 = arith.subf %30, %33 : vector<8x8xf32>
    %35 = math.exp %34 : vector<8x8xf32>
    %cst_14 = arith.constant dense<0.000000e+00> : vector<8xf32>
    %36 = vector.multi_reduction <add>, %35, %cst_14 [1] : vector<8x8xf32> to vector<8xf32>
    %37 = vector.shape_cast %36 : vector<8xf32> to vector<8x1xf32>
    %38 = tpu.reciprocal %37 {approx = true} : vector<8x1xf32> -> vector<8x1xf32>
    %39 = vector.broadcast %38 : vector<8x1xf32> to vector<8x8xf32>
    %40 = arith.mulf %35, %39 : vector<8x8xf32>
    %41 = arith.truncf %40 : vector<8x8xf32> to vector<8x8xbf16>
    %cst_15 = arith.constant dense<0.000000e+00> : vector<8x8xf32>
    %42 = tpu.matmul %41, %27, %cst_15 {dimension_numbers = #tpu.dot_dimension_numbers<[1], [0], [0], [1], [0, 0, 1, 1], [], []>} : vector<8x8xbf16>, vector<8x8xbf16>, vector<8x8xf32> -> vector<8x8xf32>
    %c0_16 = arith.constant 0 : index
    %c8 = arith.constant 8 : index
    %43 = vector.load %arg12[%c0_16, %c8] : memref<8x32xf32, #tpu.memory_space<vmem>>, vector<8x8xf32>
    tpu.vector_store %arg12[%c0_16, %c8], %42 {strides = array<i32>} : memref<8x32xf32, #tpu.memory_space<vmem>>, vector<8x8xf32>,
    %44 = vector.extract_strided_slice %5 {offsets = [0, 16], sizes = [8, 8], strides = [1, 1]} : vector<8x96xbf16> to vector<8x8xbf16>
    %45 = vector.extract_strided_slice %5 {offsets = [0, 48], sizes = [8, 8], strides = [1, 1]} : vector<8x96xbf16> to vector<8x8xbf16>
    %46 = vector.extract_strided_slice %5 {offsets = [0, 80], sizes = [8, 8], strides = [1, 1]} : vector<8x96xbf16> to vector<8x8xbf16>
    %cst_17 = arith.constant dense<0.000000e+00> : vector<8x8xf32>
    %47 = tpu.matmul %44, %45, %cst_17 {dimension_numbers = #tpu.dot_dimension_numbers<[1], [1], [0], [0], [0, 0, 1, 0], [], []>} : vector<8x8xbf16>, vector<8x8xbf16>, vector<8x8xf32> -> vector<8x8xf32>
    %cst_18 = arith.constant 0.176776692 : f32
    %48 = vector.broadcast %cst_18 : f32 to vector<8x8xf32>
    %49 = arith.mulf %47, %48 : vector<8x8xf32>
    %cst_19 = arith.constant dense<0xFF800000> : vector<8xf32>
    %50 = vector.multi_reduction <maximumf>, %49, %cst_19 [1] : vector<8x8xf32> to vector<8xf32>
    %51 = vector.shape_cast %50 : vector<8xf32> to vector<8x1xf32>
    %52 = vector.broadcast %51 : vector<8x1xf32> to vector<8x8xf32>
    %53 = arith.subf %49, %52 : vector<8x8xf32>
    %54 = math.exp %53 : vector<8x8xf32>
    %cst_20 = arith.constant dense<0.000000e+00> : vector<8xf32>
    %55 = vector.multi_reduction <add>, %54, %cst_20 [1] : vector<8x8xf32> to vector<8xf32>
    %56 = vector.shape_cast %55 : vector<8xf32> to vector<8x1xf32>
    %57 = tpu.reciprocal %56 {approx = true} : vector<8x1xf32> -> vector<8x1xf32>
    %58 = vector.broadcast %57 : vector<8x1xf32> to vector<8x8xf32>
    %59 = arith.mulf %54, %58 : vector<8x8xf32>
    %60 = arith.truncf %59 : vector<8x8xf32> to vector<8x8xbf16>
    %cst_21 = arith.constant dense<0.000000e+00> : vector<8x8xf32>
    %61 = tpu.matmul %60, %46, %cst_21 {dimension_numbers = #tpu.dot_dimension_numbers<[1], [0], [0], [1], [0, 0, 1, 1], [], []>} : vector<8x8xbf16>, vector<8x8xbf16>, vector<8x8xf32> -> vector<8x8xf32>
    %c0_22 = arith.constant 0 : index
    %c16 = arith.constant 16 : index
    %62 = vector.load %arg12[%c0_22, %c16] : memref<8x32xf32, #tpu.memory_space<vmem>>, vector<8x8xf32>
    tpu.vector_store %arg12[%c0_22, %c16], %61 {strides = array<i32>} : memref<8x32xf32, #tpu.memory_space<vmem>>, vector<8x8xf32>,
    %63 = vector.extract_strided_slice %5 {offsets = [0, 24], sizes = [8, 8], strides = [1, 1]} : vector<8x96xbf16> to vector<8x8xbf16>
    %64 = vector.extract_strided_slice %5 {offsets = [0, 56], sizes = [8, 8], strides = [1, 1]} : vector<8x96xbf16> to vector<8x8xbf16>
    %65 = vector.extract_strided_slice %5 {offsets = [0, 88], sizes = [8, 8], strides = [1, 1]} : vector<8x96xbf16> to vector<8x8xbf16>
    %cst_23 = arith.constant dense<0.000000e+00> : vector<8x8xf32>
    %66 = tpu.matmul %63, %64, %cst_23 {dimension_numbers = #tpu.dot_dimension_numbers<[1], [1], [0], [0], [0, 0, 1, 0], [], []>} : vector<8x8xbf16>, vector<8x8xbf16>, vector<8x8xf32> -> vector<8x8xf32>
    %cst_24 = arith.constant 0.176776692 : f32
    %67 = vector.broadcast %cst_24 : f32 to vector<8x8xf32>
    %68 = arith.mulf %66, %67 : vector<8x8xf32>
    %cst_25 = arith.constant dense<0xFF800000> : vector<8xf32>
    %69 = vector.multi_reduction <maximumf>, %68, %cst_25 [1] : vector<8x8xf32> to vector<8xf32>
    %70 = vector.shape_cast %69 : vector<8xf32> to vector<8x1xf32>
    %71 = vector.broadcast %70 : vector<8x1xf32> to vector<8x8xf32>
    %72 = arith.subf %68, %71 : vector<8x8xf32>
    %73 = math.exp %72 : vector<8x8xf32>
    %cst_26 = arith.constant dense<0.000000e+00> : vector<8xf32>
    %74 = vector.multi_reduction <add>, %73, %cst_26 [1] : vector<8x8xf32> to vector<8xf32>
    %75 = vector.shape_cast %74 : vector<8xf32> to vector<8x1xf32>
    %76 = tpu.reciprocal %75 {approx = true} : vector<8x1xf32> -> vector<8x1xf32>
    %77 = vector.broadcast %76 : vector<8x1xf32> to vector<8x8xf32>
    %78 = arith.mulf %73, %77 : vector<8x8xf32>
    %79 = arith.truncf %78 : vector<8x8xf32> to vector<8x8xbf16>
    %cst_27 = arith.constant dense<0.000000e+00> : vector<8x8xf32>
    %80 = tpu.matmul %79, %65, %cst_27 {dimension_numbers = #tpu.dot_dimension_numbers<[1], [0], [0], [1], [0, 0, 1, 1], [], []>} : vector<8x8xbf16>, vector<8x8xbf16>, vector<8x8xf32> -> vector<8x8xf32>
    %c0_28 = arith.constant 0 : index
    %c24 = arith.constant 24 : index
    %81 = vector.load %arg12[%c0_28, %c24] : memref<8x32xf32, #tpu.memory_space<vmem>>, vector<8x8xf32>
    tpu.vector_store %arg12[%c0_28, %c24], %80 {strides = array<i32>} : memref<8x32xf32, #tpu.memory_space<vmem>>, vector<8x8xf32>,
    %c0_29 = arith.constant 0 : index
    %c0_30 = arith.constant 0 : index
    %82 = vector.load %arg12[%c0_29, %c0_30] : memref<8x32xf32, #tpu.memory_space<vmem>>, vector<8x32xf32>
    %83 = arith.addf %1, %82 : vector<8x32xf32>
    %c0_31 = arith.constant 0 : index
    %c0_32 = arith.constant 0 : index
    %84 = vector.load %arg7[%c0_31, %c0_32] : memref<1x32xf32, #tpu.memory_space<vmem>>, vector<1x32xf32>
    %c0_33 = arith.constant 0 : index
    %c0_34 = arith.constant 0 : index
    %85 = vector.load %arg8[%c0_33, %c0_34] : memref<1x32xf32, #tpu.memory_space<vmem>>, vector<1x32xf32>
    %cst_35 = arith.constant dense<0.000000e+00> : vector<8xf32>
    %86 = vector.multi_reduction <add>, %83, %cst_35 [1] : vector<8x32xf32> to vector<8xf32>
    %87 = vector.shape_cast %86 : vector<8xf32> to vector<8x1xf32>
    %cst_36 = arith.constant 3.125000e-02 : f32
    %88 = vector.broadcast %cst_36 : f32 to vector<8x1xf32>
    %89 = arith.mulf %87, %88 : vector<8x1xf32>
    %90 = vector.broadcast %89 : vector<8x1xf32> to vector<8x32xf32>
    %91 = arith.subf %83, %90 : vector<8x32xf32>
    %92 = arith.mulf %91, %91 : vector<8x32xf32>
    %cst_37 = arith.constant dense<0.000000e+00> : vector<8xf32>
    %93 = vector.multi_reduction <add>, %92, %cst_37 [1] : vector<8x32xf32> to vector<8xf32>
    %94 = vector.shape_cast %93 : vector<8xf32> to vector<8x1xf32>
    %cst_38 = arith.constant 0.0322580636 : f32
    %95 = vector.broadcast %cst_38 : f32 to vector<8x1xf32>
    %96 = arith.mulf %94, %95 : vector<8x1xf32>
    %97 = math.sqrt %96 : vector<8x1xf32>
    %cst_39 = arith.constant 9.99999997E-7 : f32
    %98 = vector.broadcast %cst_39 : f32 to vector<8x1xf32>
    %99 = arith.addf %97, %98 : vector<8x1xf32>
    %100 = tpu.reciprocal %99 : vector<8x1xf32> -> vector<8x1xf32>
    %101 = vector.broadcast %100 : vector<8x1xf32> to vector<8x32xf32>
    %102 = arith.mulf %91, %101 : vector<8x32xf32>
    %103 = vector.broadcast %84 : vector<1x32xf32> to vector<8x32xf32>
    %104 = arith.mulf %102, %103 : vector<8x32xf32>
    %105 = vector.broadcast %85 : vector<1x32xf32> to vector<8x32xf32>
    %106 = arith.addf %104, %105 : vector<8x32xf32>
    %107 = arith.truncf %106 : vector<8x32xf32> to vector<8x32xbf16>
    %c0_40 = arith.constant 0 : index
    %c0_41 = arith.constant 0 : index
    %108 = vector.load %arg3[%c0_40, %c0_41] : memref<32x64xbf16, #tpu.memory_space<vmem>>, vector<32x64xbf16>
    %cst_42 = arith.constant dense<0.000000e+00> : vector<8x64xf32>
    %109 = tpu.matmul %107, %108, %cst_42 {dimension_numbers = #tpu.dot_dimension_numbers<[1], [0], [0], [1], [0, 0, 1, 1], [], []>} : vector<8x32xbf16>, vector<32x64xbf16>, vector<8x64xf32> -> vector<8x64xf32>
    %c0_43 = arith.constant 0 : index
    %c0_44 = arith.constant 0 : index
    %110 = vector.load %arg4[%c0_43, %c0_44] : memref<1x64xf32, #tpu.memory_space<vmem>>, vector<1x64xf32>
    %111 = vector.broadcast %110 : vector<1x64xf32> to vector<8x64xf32>
    %112 = arith.addf %109, %111 : vector<8x64xf32>
    %cst_45 = arith.constant 0.000000e+00 : f32
    %113 = vector.broadcast %cst_45 : f32 to vector<8x64xf32>
    %114 = arith.maximumf %112, %113 : vector<8x64xf32>
    %115 = arith.truncf %114 : vector<8x64xf32> to vector<8x64xbf16>
    %c0_46 = arith.constant 0 : index
    %c0_47 = arith.constant 0 : index
    %116 = vector.load %arg5[%c0_46, %c0_47] : memref<64x32xbf16, #tpu.memory_space<vmem>>, vector<64x32xbf16>
    %cst_48 = arith.constant dense<0.000000e+00> : vector<8x32xf32>
    %117 = tpu.matmul %115, %116, %cst_48 {dimension_numbers = #tpu.dot_dimension_numbers<[1], [0], [0], [1], [0, 0, 1, 1], [], []>} : vector<8x64xbf16>, vector<64x32xbf16>, vector<8x32xf32> -> vector<8x32xf32>
    %c0_49 = arith.constant 0 : index
    %c0_50 = arith.constant 0 : index
    %118 = vector.load %arg6[%c0_49, %c0_50] : memref<1x32xf32, #tpu.memory_space<vmem>>, vector<1x32xf32>
    %119 = vector.broadcast %118 : vector<1x32xf32> to vector<8x32xf32>
    %120 = arith.addf %117, %119 : vector<8x32xf32>
    %121 = arith.addf %106, %120 : vector<8x32xf32>
    %c0_51 = arith.constant 0 : index
    %c0_52 = arith.constant 0 : index
    %122 = vector.load %arg9[%c0_51, %c0_52] : memref<1x32xf32, #tpu.memory_space<vmem>>, vector<1x32xf32>
    %c0_53 = arith.constant 0 : index
    %c0_54 = arith.constant 0 : index
    %123 = vector.load %arg10[%c0_53, %c0_54] : memref<1x32xf32, #tpu.memory_space<vmem>>, vector<1x32xf32>
    %cst_55 = arith.constant dense<0.000000e+00> : vector<8xf32>
    %124 = vector.multi_reduction <add>, %121, %cst_55 [1] : vector<8x32xf32> to vector<8xf32>
    %125 = vector.shape_cast %124 : vector<8xf32> to vector<8x1xf32>
    %cst_56 = arith.constant 3.125000e-02 : f32
    %126 = vector.broadcast %cst_56 : f32 to vector<8x1xf32>
    %127 = arith.mulf %125, %126 : vector<8x1xf32>
    %128 = vector.broadcast %127 : vector<8x1xf32> to vector<8x32xf32>
    %129 = arith.subf %121, %128 : vector<8x32xf32>
    %130 = arith.mulf %129, %129 : vector<8x32xf32>
    %cst_57 = arith.constant dense<0.000000e+00> : vector<8xf32>
    %131 = vector.multi_reduction <add>, %130, %cst_57 [1] : vector<8x32xf32> to vector<8xf32>
    %132 = vector.shape_cast %131 : vector<8xf32> to vector<8x1xf32>
    %cst_58 = arith.constant 0.0322580636 : f32
    %133 = vector.broadcast %cst_58 : f32 to vector<8x1xf32>
    %134 = arith.mulf %132, %133 : vector<8x1xf32>
    %135 = math.sqrt %134 : vector<8x1xf32>
    %cst_59 = arith.constant 9.99999997E-7 : f32
    %136 = vector.broadcast %cst_59 : f32 to vector<8x1xf32>
    %137 = arith.addf %135, %136 : vector<8x1xf32>
    %138 = tpu.reciprocal %137 : vector<8x1xf32> -> vector<8x1xf32>
    %139 = vector.broadcast %138 : vector<8x1xf32> to vector<8x32xf32>
    %140 = arith.mulf %129, %139 : vector<8x32xf32>
    %141 = vector.broadcast %122 : vector<1x32xf32> to vector<8x32xf32>
    %142 = arith.mulf %140, %141 : vector<8x32xf32>
    %143 = vector.broadcast %123 : vector<1x32xf32> to vector<8x32xf32>
    %144 = arith.addf %142, %143 : vector<8x32xf32>
    %c0_60 = arith.constant 0 : index
    %c0_61 = arith.constant 0 : index
    %c0_62 = arith.constant 0 : index
    %145 = vector.load %arg11[%c0_60, %c0_61, %c0_62] : memref<1x8x32xf32, #tpu.memory_space<vmem>>, vector<1x8x32xf32>
    %146 = vector.shape_cast %145 : vector<1x8x32xf32> to vector<8x32xf32>
    %147 = vector.shape_cast %144 : vector<8x32xf32> to vector<1x8x32xf32>
    tpu.vector_store %arg11[%c0_60, %c0_61, %c0_62], %147 {strides = array<i32>} : memref<1x8x32xf32, #tpu.memory_space<vmem>>, vector<1x8x32xf32>,
    return
  }
  func.func @transform_0(%arg0: i32) -> (i32, i32, i32) {
    %c0_i32 = arith.constant 0 : i32
    %c0_i32_0 = arith.constant 0 : i32
    %c0_i32_1 = arith.constant 0 : i32
    return %arg0, %c0_i32, %c0_i32_0 : i32, i32, i32
  }
  func.func @transform_1(%arg0: i32) -> (i32, i32) {
    %c0_i32 = arith.constant 0 : i32
    %c0_i32_0 = arith.constant 0 : i32
    %c0_i32_1 = arith.constant 0 : i32
    return %c0_i32, %c0_i32_0 : i32, i32
  }
  func.func @transform_2(%arg0: i32) -> (i32, i32) {
    %c0_i32 = arith.constant 0 : i32
    %c0_i32_0 = arith.constant 0 : i32
    %c0_i32_1 = arith.constant 0 : i32
    return %c0_i32, %c0_i32_0 : i32, i32
  }
  func.func @transform_3(%arg0: i32) -> (i32, i32) {
    %c0_i32 = arith.constant 0 : i32
    %c0_i32_0 = arith.constant 0 : i32
    %c0_i32_1 = arith.constant 0 : i32
    return %c0_i32, %c0_i32_0 : i32, i32
  }
  func.func @transform_4(%arg0: i32) -> (i32, i32) {
    %c0_i32 = arith.constant 0 : i32
    %c0_i32_0 = arith.constant 0 : i32
    %c0_i32_1 = arith.constant 0 : i32
    return %c0_i32, %c0_i32_0 : i32, i32
  }
  func.func @transform_5(%arg0: i32) -> (i32, i32) {
    %c0_i32 = arith.constant 0 : i32
    %c0_i32_0 = arith.constant 0 : i32
    %c0_i32_1 = arith.constant 0 : i32
    return %c0_i32, %c0_i32_0 : i32, i32
  }
  func.func @transform_6(%arg0: i32) -> (i32, i32) {
    %c0_i32 = arith.constant 0 : i32
    %c0_i32_0 = arith.constant 0 : i32
    %c0_i32_1 = arith.constant 0 : i32
    return %c0_i32, %c0_i32_0 : i32, i32
  }
  func.func @transform_7(%arg0: i32) -> (i32, i32) {
    %c0_i32 = arith.constant 0 : i32
    %c0_i32_0 = arith.constant 0 : i32
    %c0_i32_1 = arith.constant 0 : i32
    return %c0_i32, %c0_i32_0 : i32, i32
  }
  func.func @transform_8(%arg0: i32) -> (i32, i32) {
    %c0_i32 = arith.constant 0 : i32
    %c0_i32_0 = arith.constant 0 : i32
    %c0_i32_1 = arith.constant 0 : i32
    return %c0_i32, %c0_i32_0 : i32, i32
  }
  func.func @transform_9(%arg0: i32) -> (i32, i32) {
    %c0_i32 = arith.constant 0 : i32
    %c0_i32_0 = arith.constant 0 : i32
    %c0_i32_1 = arith.constant 0 : i32
    return %c0_i32, %c0_i32_0 : i32, i32
  }
  func.func @transform_10(%arg0: i32) -> (i32, i32, i32) {
    %c0_i32 = arith.constant 0 : i32
    %c0_i32_0 = arith.constant 0 : i32
    %c0_i32_1 = arith.constant 0 : i32
    return %arg0, %c0_i32, %c0_i32_0 : i32, i32, i32
  }
}

</mosaic_0001>

<llo_original>
// kernel: tpu_custom_call.1
$region0: #{tpu_custom_call.1}
  #allocation0 [shape = 'u32[]', space=smem, size = 0x4, offset = 0x4, fixed_abs, tag = 'smem constant byte address 0x4 - core index']
  #allocation1 [shape = 'u32[144,128]{1,0:T(1,128)}', space=vmem, size = 0x12000, scoped, tag = 'internal scratch']
  #allocation2 [shape = 'f32[8,32]{1,0:T(8,128)}', space=vmem, size = 0x1000, scoped, tag = 'scratch operand']
  %s0 = inlined_call_operand.vmem [shape: f32[2,8,32], index: 0, kind: input, shape index: {}]
  %s1 = inlined_call_operand.vmem [shape: bf16[32,96], index: 1, kind: input, shape index: {}]
  %s2 = inlined_call_operand.vmem [shape: bf16[32,64], index: 2, kind: input, shape index: {}]
  %s3 = inlined_call_operand.vmem [shape: f32[1,64], index: 3, kind: input, shape index: {}]
  %s4 = inlined_call_operand.vmem [shape: bf16[64,32], index: 4, kind: input, shape index: {}]
  %s5 = inlined_call_operand.vmem [shape: f32[1,32], index: 5, kind: input, shape index: {}]
  %s6 = inlined_call_operand.vmem [shape: f32[1,32], index: 6, kind: input, shape index: {}]
  %s7 = inlined_call_operand.vmem [shape: f32[1,32], index: 7, kind: input, shape index: {}]
  %s8 = inlined_call_operand.vmem [shape: f32[1,32], index: 8, kind: input, shape index: {}]
  %s9 = inlined_call_operand.vmem [shape: f32[1,32], index: 9, kind: input, shape index: {}]
  %s10 = inlined_call_operand.hbm [shape: f32[2,8,32], index: 10, kind: output, shape index: {}]
  %s11 = sld [smem:[#allocation0]]
  $region73: #{tpu_custom_call.1} parent=0
    _
  %s13 = ssub.s32 1, %s11
  %s14 = scalar_select 0, %s13, %s11
  $region1: #{tpu_custom_call.1} parent=0
    #allocation3 [shape = 'u8[8192]{0}', space=vmem, size = 0x2000, scoped, tag = 'output window, operand 0']
    #allocation4 [shape = 's32[2]{0}', space=sflag, size = 0x8, scoped, tag = 'scoped memory for tpu_custom_call.1']
    %15 = vsyncpa [#allocation4], 0
    %s16 = scalar_lea.sflag [#allocation4], 1
    %17 = vsyncpa %s16, 0
    loop: start=0, step=1, limit=4
    $region2: #{tpu_custom_call.1} parent=1 // loop_pre_header
      _
    $region3: #{tpu_custom_call.1} parent=1 // loop_header
      %s19 = sphi 0, %s23
      %p20 = scmp.ge.s32.totalorder %s19, 4
      %s29 = sphi 0, %s31
      %s32 = sphi 0, %s29
      %s33 = sphi 0, %s32
      %s49 = sphi 0, %s33
      %s53 = sphi 0, %s53
      %s55 = sphi 0, %s53
      %s56 = sphi 0, %s55
      %s70 = sphi 0, %s56
      %s74 = sphi 0, %s74
      %s76 = sphi 0, %s74
      %s77 = sphi 0, %s76
      %s91 = sphi 0, %s77
      %s95 = sphi 0, %s95
      %s97 = sphi 0, %s95
      %s98 = sphi 0, %s97
      %s112 = sphi 0, %s98
      %s116 = sphi 0, %s116
      %s118 = sphi 0, %s116
      %s119 = sphi 0, %s118
      %s133 = sphi 0, %s119
      %s137 = sphi 0, %s137
      %s139 = sphi 0, %s137
      %s140 = sphi 0, %s139
      %s154 = sphi 0, %s140
      %s158 = sphi 0, %s158
      %s160 = sphi 0, %s158
      %s161 = sphi 0, %s160
      %s175 = sphi 0, %s161
      %s179 = sphi 0, %s179
      %s181 = sphi 0, %s179
      %s182 = sphi 0, %s181
      %s196 = sphi 0, %s182
      %s200 = sphi 0, %s200
      %s202 = sphi 0, %s200
      %s203 = sphi 0, %s202
      %s217 = sphi 0, %s203
      %s221 = sphi 0, %s221
      %s223 = sphi 0, %s221
      %s224 = sphi 0, %s223
      %s238 = sphi 0, %s224
      %s244 = sphi 0, %s246
      %s247 = sphi 0, %s244
      %s248 = sphi 0, %s247
      %s264 = sphi 0, %s248
    $region4: #{tpu_custom_call.1} parent=1 // loop_header_branch
      %22 = sbr.rel (%p20) target = $region8
    $region5: #{tpu_custom_call.1} parent=1 // loop_body
      %s24 = ssub.s32 %s19, 1
      %s25 = ssub.s32 %s19, 2
      %s26 = sadd.s32 %s19, 1
      %s27 = ssub.s32 %s19, %s26
      %p28 = scmp.eq.s32.totalorder %s27, 0
      %s30 = sadd.s32 %s29, 1
      %s31 = scalar_select %p28, %s29, %s30
      %p34 = pneg %p28
      %p35 = scmp.eq.s32.totalorder %s19, 1
      %p36 = por %p34, %p35
      %p37 = scmp.ne.s32.totalorder %s29, %s32
      %p38 = scmp.eq.s32.totalorder %s19, 0
      %p39 = por %p37, %p38
      %p40 = scmp.ne.s32.totalorder %s29, %s32
      %p41 = scmp.eq.s32.totalorder %s24, 1
      %p42 = por %p40, %p41
      %p43 = scmp.ne.s32.totalorder %s32, %s33
      %p44 = scmp.eq.s32.totalorder %s24, 0
      %p45 = por %p43, %p44
      %p46 = scmp.ne.s32.totalorder %s32, %s33
      %p47 = scmp.eq.s32.totalorder %s25, 1
      %p48 = por %p46, %p47
      %p50 = scmp.ne.s32.totalorder %s33, %s49
      %p51 = scmp.eq.s32.totalorder %s25, 0
      %p52 = por %p50, %p51
      %s54 = sadd.s32 %s53, 1
      %p57 = scmp.eq.s32.totalorder %s19, 1
      %p58 = scmp.ne.s32.totalorder %s53, %s55
      %p59 = scmp.eq.s32.totalorder %s19, 0
      %p60 = por %p58, %p59
      %p61 = scmp.ne.s32.totalorder %s53, %s55
      %p62 = scmp.eq.s32.totalorder %s24, 1
      %p63 = por %p61, %p62
      %p64 = scmp.ne.s32.totalorder %s55, %s56
      %p65 = scmp.eq.s32.totalorder %s24, 0
      %p66 = por %p64, %p65
      %p67 = scmp.ne.s32.totalorder %s55, %s56
      %p68 = scmp.eq.s32.totalorder %s25, 1
      %p69 = por %p67, %p68
      %p71 = scmp.ne.s32.totalorder %s56, %s70
      %p72 = scmp.eq.s32.totalorder %s25, 0
      %p73 = por %p71, %p72
      %s75 = sadd.s32 %s74, 1
      %p78 = scmp.eq.s32.totalorder %s19, 1
      %p79 = scmp.ne.s32.totalorder %s74, %s76
      %p80 = scmp.eq.s32.totalorder %s19, 0
      %p81 = por %p79, %p80
      %p82 = scmp.ne.s32.totalorder %s74, %s76
      %p83 = scmp.eq.s32.totalorder %s24, 1
      %p84 = por %p82, %p83
      %p85 = scmp.ne.s32.totalorder %s76, %s77
      %p86 = scmp.eq.s32.totalorder %s24, 0
      %p87 = por %p85, %p86
      %p88 = scmp.ne.s32.totalorder %s76, %s77
      %p89 = scmp.eq.s32.totalorder %s25, 1
      %p90 = por %p88, %p89
      %p92 = scmp.ne.s32.totalorder %s77, %s91
      %p93 = scmp.eq.s32.totalorder %s25, 0
      %p94 = por %p92, %p93
      %s96 = sadd.s32 %s95, 1
      %p99 = scmp.eq.s32.totalorder %s19, 1
      %p100 = scmp.ne.s32.totalorder %s95, %s97
      %p101 = scmp.eq.s32.totalorder %s19, 0
      %p102 = por %p100, %p101
      %p103 = scmp.ne.s32.totalorder %s95, %s97
      %p104 = scmp.eq.s32.totalorder %s24, 1
      %p105 = por %p103, %p104
      %p106 = scmp.ne.s32.totalorder %s97, %s98
      %p107 = scmp.eq.s32.totalorder %s24, 0
      %p108 = por %p106, %p107
      %p109 = scmp.ne.s32.totalorder %s97, %s98
      %p110 = scmp.eq.s32.totalorder %s25, 1
      %p111 = por %p109, %p110
      %p113 = scmp.ne.s32.totalorder %s98, %s112
      %p114 = scmp.eq.s32.totalorder %s25, 0
      %p115 = por %p113, %p114
      %s117 = sadd.s32 %s116, 1
      %p120 = scmp.eq.s32.totalorder %s19, 1
      %p121 = scmp.ne.s32.totalorder %s116, %s118
      %p122 = scmp.eq.s32.totalorder %s19, 0
      %p123 = por %p121, %p122
      %p124 = scmp.ne.s32.totalorder %s116, %s118
      %p125 = scmp.eq.s32.totalorder %s24, 1
      %p126 = por %p124, %p125
      %p127 = scmp.ne.s32.totalorder %s118, %s119
      %p128 = scmp.eq.s32.totalorder %s24, 0
      %p129 = por %p127, %p128
      %p130 = scmp.ne.s32.totalorder %s118, %s119
      %p131 = scmp.eq.s32.totalorder %s25, 1
      %p132 = por %p130, %p131
      %p134 = scmp.ne.s32.totalorder %s119, %s133
      %p135 = scmp.eq.s32.totalorder %s25, 0
      %p136 = por %p134, %p135
      %s138 = sadd.s32 %s137, 1
      %p141 = scmp.eq.s32.totalorder %s19, 1
      %p142 = scmp.ne.s32.totalorder %s137, %s139
      %p143 = scmp.eq.s32.totalorder %s19, 0
      %p144 = por %p142, %p143
      %p145 = scmp.ne.s32.totalorder %s137, %s139
      %p146 = scmp.eq.s32.totalorder %s24, 1
      %p147 = por %p145, %p146
      %p148 = scmp.ne.s32.totalorder %s139, %s140
      %p149 = scmp.eq.s32.totalorder %s24, 0
      %p150 = por %p148, %p149
      %p151 = scmp.ne.s32.totalorder %s139, %s140
      %p152 = scmp.eq.s32.totalorder %s25, 1
      %p153 = por %p151, %p152
      %p155 = scmp.ne.s32.totalorder %s140, %s154
      %p156 = scmp.eq.s32.totalorder %s25, 0
      %p157 = por %p155, %p156
      %s159 = sadd.s32 %s158, 1
      %p162 = scmp.eq.s32.totalorder %s19, 1
      %p163 = scmp.ne.s32.totalorder %s158, %s160
      %p164 = scmp.eq.s32.totalorder %s19, 0
      %p165 = por %p163, %p164
      %p166 = scmp.ne.s32.totalorder %s158, %s160
      %p167 = scmp.eq.s32.totalorder %s24, 1
      %p168 = por %p166, %p167
      %p169 = scmp.ne.s32.totalorder %s160, %s161
      %p170 = scmp.eq.s32.totalorder %s24, 0
      %p171 = por %p169, %p170
      %p172 = scmp.ne.s32.totalorder %s160, %s161
      %p173 = scmp.eq.s32.totalorder %s25, 1
      %p174 = por %p172, %p173
      %p176 = scmp.ne.s32.totalorder %s161, %s175
      %p177 = scmp.eq.s32.totalorder %s25, 0
      %p178 = por %p176, %p177
      %s180 = sadd.s32 %s179, 1
      %p183 = scmp.eq.s32.totalorder %s19, 1
      %p184 = scmp.ne.s32.totalorder %s179, %s181
      %p185 = scmp.eq.s32.totalorder %s19, 0
      %p186 = por %p184, %p185
      %p187 = scmp.ne.s32.totalorder %s179, %s181
      %p188 = scmp.eq.s32.totalorder %s24, 1
      %p189 = por %p187, %p188
      %p190 = scmp.ne.s32.totalorder %s181, %s182
      %p191 = scmp.eq.s32.totalorder %s24, 0
      %p192 = por %p190, %p191
      %p193 = scmp.ne.s32.totalorder %s181, %s182
      %p194 = scmp.eq.s32.totalorder %s25, 1
      %p195 = por %p193, %p194
      %p197 = scmp.ne.s32.totalorder %s182, %s196
      %p198 = scmp.eq.s32.totalorder %s25, 0
      %p199 = por %p197, %p198
      %s201 = sadd.s32 %s200, 1
      %p204 = scmp.eq.s32.totalorder %s19, 1
      %p205 = scmp.ne.s32.totalorder %s200, %s202
      %p206 = scmp.eq.s32.totalorder %s19, 0
      %p207 = por %p205, %p206
      %p208 = scmp.ne.s32.totalorder %s200, %s202
      %p209 = scmp.eq.s32.totalorder %s24, 1
      %p210 = por %p208, %p209
      %p211 = scmp.ne.s32.totalorder %s202, %s203
      %p212 = scmp.eq.s32.totalorder %s24, 0
      %p213 = por %p211, %p212
      %p214 = scmp.ne.s32.totalorder %s202, %s203
      %p215 = scmp.eq.s32.totalorder %s25, 1
      %p216 = por %p214, %p215
      %p218 = scmp.ne.s32.totalorder %s203, %s217
      %p219 = scmp.eq.s32.totalorder %s25, 0
      %p220 = por %p218, %p219
      %s222 = sadd.s32 %s221, 1
      %p225 = scmp.eq.s32.totalorder %s19, 1
      %p226 = scmp.ne.s32.totalorder %s221, %s223
      %p227 = scmp.eq.s32.totalorder %s19, 0
      %p228 = por %p226, %p227
      %p229 = scmp.ne.s32.totalorder %s221, %s223
      %p230 = scmp.eq.s32.totalorder %s24, 1
      %p231 = por %p229, %p230
      %p232 = scmp.ne.s32.totalorder %s223, %s224
      %p233 = scmp.eq.s32.totalorder %s24, 0
      %p234 = por %p232, %p233
      %p235 = scmp.ne.s32.totalorder %s223, %s224
      %p236 = scmp.eq.s32.totalorder %s25, 1
      %p237 = por %p235, %p236
      %p239 = scmp.ne.s32.totalorder %s224, %s238
      %p240 = scmp.eq.s32.totalorder %s25, 0
      %p241 = por %p239, %p240
      %s242 = ssub.s32 %s19, %s26
      %p243 = scmp.eq.s32.totalorder %s242, 0
      %s245 = sadd.s32 %s244, 1
      %s246 = scalar_select %p243, %s244, %s245
      %p249 = pneg %p243
      %p250 = scmp.eq.s32.totalorder %s19, 1
      %p251 = por %p249, %p250
      %p252 = scmp.ne.s32.totalorder %s244, %s247
      %p253 = scmp.eq.s32.totalorder %s19, 0
      %p254 = por %p252, %p253
      %p255 = scmp.ne.s32.totalorder %s244, %s247
      %p256 = scmp.eq.s32.totalorder %s24, 1
      %p257 = por %p255, %p256
      %p258 = scmp.ne.s32.totalorder %s247, %s248
      %p259 = scmp.eq.s32.totalorder %s24, 0
      %p260 = por %p258, %p259
      %p261 = scmp.ne.s32.totalorder %s247, %s248
      %p262 = scmp.eq.s32.totalorder %s25, 1
      %p263 = por %p261, %p262
      %p265 = scmp.ne.s32.totalorder %s248, %s264
      %p266 = scmp.eq.s32.totalorder %s25, 0
      %p267 = por %p265, %p266
      %p268 = scmp.le.s32.totalorder 1, %s19
      %p269 = scmp.lt.s32.totalorder %s19, 3
      %p270 = pnand %p268, %p269
      %p271 = pneg %p270
      // Predicated region
      $region9: #{tpu_custom_call.1} parent=5 // pred_check
        _
      $region10: #{tpu_custom_call.1} parent=5 // pred_check_branch
        %273 = sbr.rel (%p270) target = $region12
      $region11: #{tpu_custom_call.1} parent=5 // pred_region
        %s274 = ssub.s32 %s19, 1
        // Predicated region
        $region13: #{tpu_custom_call.1} parent=11 // pred_check
          %p275 = pneg %p66
        $region14: #{tpu_custom_call.1} parent=11 // pred_check_branch
          %277 = sbr.rel (%p275) target = $region16
        $region15: #{tpu_custom_call.1} parent=11 // pred_region
          _
        $region16: #{tpu_custom_call.1} parent=11 // pred_fallthru
          _
        // Predicated region
        $region17: #{tpu_custom_call.1} parent=11 // pred_check
          %p278 = pneg %p87
        $region18: #{tpu_custom_call.1} parent=11 // pred_check_branch
          %280 = sbr.rel (%p278) target = $region20
        $region19: #{tpu_custom_call.1} parent=11 // pred_region
          _
        $region20: #{tpu_custom_call.1} parent=11 // pred_fallthru
          _
        // Predicated region
        $region21: #{tpu_custom_call.1} parent=11 // pred_check
          %p281 = pneg %p108
        $region22: #{tpu_custom_call.1} parent=11 // pred_check_branch
          %283 = sbr.rel (%p281) target = $region24
        $region23: #{tpu_custom_call.1} parent=11 // pred_region
          _
        $region24: #{tpu_custom_call.1} parent=11 // pred_fallthru
          _
        // Predicated region
        $region25: #{tpu_custom_call.1} parent=11 // pred_check
          %p284 = pneg %p129
        $region26: #{tpu_custom_call.1} parent=11 // pred_check_branch
          %286 = sbr.rel (%p284) target = $region28
        $region27: #{tpu_custom_call.1} parent=11 // pred_region
          _
        $region28: #{tpu_custom_call.1} parent=11 // pred_fallthru
          _
        // Predicated region
        $region29: #{tpu_custom_call.1} parent=11 // pred_check
          %p287 = pneg %p150
        $region30: #{tpu_custom_call.1} parent=11 // pred_check_branch
          %289 = sbr.rel (%p287) target = $region32
        $region31: #{tpu_custom_call.1} parent=11 // pred_region
          _
        $region32: #{tpu_custom_call.1} parent=11 // pred_fallthru
          _
        // Predicated region
        $region33: #{tpu_custom_call.1} parent=11 // pred_check
          %p290 = pneg %p171
        $region34: #{tpu_custom_call.1} parent=11 // pred_check_branch
          %292 = sbr.rel (%p290) target = $region36
        $region35: #{tpu_custom_call.1} parent=11 // pred_region
          _
        $region36: #{tpu_custom_call.1} parent=11 // pred_fallthru
          _
        // Predicated region
        $region37: #{tpu_custom_call.1} parent=11 // pred_check
          %p293 = pneg %p192
        $region38: #{tpu_custom_call.1} parent=11 // pred_check_branch
          %295 = sbr.rel (%p293) target = $region40
        $region39: #{tpu_custom_call.1} parent=11 // pred_region
          _
        $region40: #{tpu_custom_call.1} parent=11 // pred_fallthru
          _
        // Predicated region
        $region41: #{tpu_custom_call.1} parent=11 // pred_check
          %p296 = pneg %p213
        $region42: #{tpu_custom_call.1} parent=11 // pred_check_branch
          %298 = sbr.rel (%p296) target = $region44
        $region43: #{tpu_custom_call.1} parent=11 // pred_region
          _
        $region44: #{tpu_custom_call.1} parent=11 // pred_fallthru
          _
        // Predicated region
        $region45: #{tpu_custom_call.1} parent=11 // pred_check
          %p299 = pneg %p234
        $region46: #{tpu_custom_call.1} parent=11 // pred_check_branch
          %301 = sbr.rel (%p299) target = $region48
        $region47: #{tpu_custom_call.1} parent=11 // pred_region
          _
        $region48: #{tpu_custom_call.1} parent=11 // pred_fallthru
          _
      $region12: #{tpu_custom_call.1} parent=5 // pred_fallthru
        _
      %p302 = scmp.lt.s32.totalorder %s19, 2
      // Predicated region
      $region49: #{tpu_custom_call.1} parent=5 // pred_check
        %p303 = pneg %p302
      $region50: #{tpu_custom_call.1} parent=5 // pred_check_branch
        %305 = sbr.rel (%p303) target = $region52
      $region51: #{tpu_custom_call.1} parent=5 // pred_region
        // Predicated region
        $region53: #{tpu_custom_call.1} parent=51 // pred_check
          %p306 = pneg %p39
        $region54: #{tpu_custom_call.1} parent=51 // pred_check_branch
          %308 = sbr.rel (%p306) target = $region56
        $region55: #{tpu_custom_call.1} parent=51 // pred_region
          %p309 = scmp.lt.s32.totalorder %s19, 1
          %s310 = scalar_select %p309, %s19, 1
          %s311 = smul.addr %s310, 8
          %s312 = scalar_lea.vmem %s0, %s311
        $region56: #{tpu_custom_call.1} parent=51 // pred_fallthru
          _
      $region52: #{tpu_custom_call.1} parent=5 // pred_fallthru
        _
      %p313 = scmp.le.s32.totalorder 1, %s19
      %p314 = scmp.lt.s32.totalorder %s19, 3
      %p315 = pnand %p313, %p314
      %p316 = pneg %p315
      // Predicated region
      $region57: #{tpu_custom_call.1} parent=5 // pred_check
        _
      $region58: #{tpu_custom_call.1} parent=5 // pred_check_branch
        %318 = sbr.rel (%p315) target = $region60
      $region59: #{tpu_custom_call.1} parent=5 // pred_region
        %s319 = ssub.s32 %s19, 1
        %p320 = scmp.lt.s32.totalorder %s24, 1
        %s321 = scalar_select %p320, %s24, 1
        %s322 = smul.addr %s321, 8
        %s323 = scalar_lea.vmem %s0, %s322
        %p324 = pneg %p45
        %p325 = pneg %p42
        %p326 = pneg %p66
        %p327 = pneg %p63
        %p328 = pneg %p87
        %p329 = pneg %p84
        %p330 = pneg %p108
        %p331 = pneg %p105
        %p332 = pneg %p129
        %p333 = pneg %p126
        %p334 = pneg %p150
        %p335 = pneg %p147
        %p336 = pneg %p171
        %p337 = pneg %p168
        %p338 = pneg %p192
        %p339 = pneg %p189
        %p340 = pneg %p213
        %p341 = pneg %p210
        %p342 = pneg %p234
        %p343 = pneg %p231
        %p344 = pneg %p260
        %p345 = pneg %p257
        %s346 = sand.u32 %s247, 1
        %s347 = scalar_lea.sflag [#allocation4], %s346
        %s348 = sand.u32 %s247, 1
        %s349 = smul.addr %s348, 8
        %s350 = scalar_lea.vmem [#allocation3], %s349
        %p351 = scmp.lt.s32.totalorder %s24, 1
        %s352 = scalar_select %p351, %s24, 1
        %s353 = smul.addr %s352, 8
        %s354 = scalar_lea.vmem %s0, %s353
        %v356 = vld [vmem:[%s354] sm:$0xff]
        %v357 = vpack.c.bf16 %v356, %v356
        %v358 = vld [vmem:[%s1] sm:$0xf]
        %v359 = vld [vmem:[%s1 + $0x4] sm:$0xf]
        %v360 = vld [vmem:[%s1 + $0x8] sm:$0xf]
        %v361 = vld [vmem:[%s1 + $0xc] sm:$0xf]
        %v366 = vunpack.c.l.b16 %v358
        %v367 = vunpack.c.l.b16 %v359
        %v368 = vunpack.c.l.b16 %v360
        %v369 = vunpack.c.l.b16 %v361
        %v370 = vpack.c.b16 %v367, %v366
        %v371 = vpack.c.b16 %v369, %v368
        %vm374 = vcmask 261120
        %v376 = vsel %vm374, %v357, 0
        %378 = vmatprep.subr.bf16.mxu0 0
        %379 = vmatpush1.bf16.msra.mxu0 %v370
        %380 = vmatprep.subr.bf16.mxu0 0
        %381 = vmatpush1.bf16.msra.mxu0 %v371
        %382 = vmatprep.subr.bf16.mxu0 0
        %383 = vmatpush1.bf16.msra.mxu0 0
        %384 = vmatprep.subr.bf16.mxu0 0
        %385 = vmatpush1.bf16.msra.mxu0 0
        %386 = vmatprep.subr.bf16.mxu0 0
        %387 = vmatpush1.bf16.msra.mxu0 0
        %388 = vmatprep.subr.bf16.mxu0 0
        %389 = vmatpush1.bf16.msra.mxu0 0
        %390 = vmatprep.subr.bf16.mxu0 0
        %391 = vmatpush1.bf16.msra.mxu0 0
        %392 = vmatprep.subr.bf16.mxu0 0
        %393 = vmatpush1.bf16.msra.mxu0 0
        %394 = vmatprep.subr.bf16.mxu0 0
        %395 = vmatpush1.bf16.msra.mxu0 0
        %396 = vmatprep.subr.bf16.mxu0 0
        %397 = vmatpush1.bf16.msra.mxu0 0
        %398 = vmatprep.subr.bf16.mxu0 0
        %399 = vmatpush1.bf16.msra.mxu0 0
        %400 = vmatprep.subr.bf16.mxu0 0
        %401 = vmatpush1.bf16.msra.mxu0 0
        %402 = vmatprep.subr.bf16.mxu0 0
        %403 = vmatpush1.bf16.msra.mxu0 0
        %404 = vmatprep.subr.bf16.mxu0 0
        %405 = vmatpush1.bf16.msra.mxu0 0
        %406 = vmatprep.subr.bf16.mxu0 0
        %407 = vmatpush1.bf16.msra.mxu0 0
        %408 = vmatprep.subr.bf16.mxu0 0
        %409 = vmatpush1.bf16.msra.mxu0 0
        %410 = vmatprep.mubr.bf16.mxu0 0
        %411 = vmatmul.mubr.bf16.gmra.mrb[0].mxu0 %v376
        %v412 = vpop.f32.mrb[0].mxu0
        %v413 = vadd.f32 0.0, %v412
        %v414 = vpop.f32.mrb[0].mxu0
        %v415 = vpop.f32.mrb[0].mxu0
        %v416 = vpop.f32.mrb[0].mxu0
        %417 = vdwg.mxu0
        %v418 = vpack.c.bf16 %v413, %v413
        %420 = vrot.lane.b32.xlu0 %v418, 96
        %v421 = vpop.permute.xlu0 %420
        %vm422 = vcmask 64512
        %v424 = vsel %vm422, %v418, 0
        %v427 = vsel %vm422, %v421, 0
        %429 = vmatprep.subr.bf16.mxu0 0
        %430 = vmatpush1.bf16.xpose.msra.mxu0 %v427
        %431 = vmatprep.subr.bf16.mxu0 0
        %432 = vmatpush1.bf16.xpose.msra.mxu0 0
        %433 = vmatprep.subr.bf16.mxu0 0
        %434 = vmatpush1.bf16.xpose.msra.mxu0 0
        %435 = vmatprep.subr.bf16.mxu0 0
        %436 = vmatpush1.bf16.xpose.msra.mxu0 0
        %437 = vmatprep.subr.bf16.mxu0 0
        %438 = vmatpush1.bf16.xpose.msra.mxu0 0
        %439 = vmatprep.subr.bf16.mxu0 0
        %440 = vmatpush1.bf16.xpose.msra.mxu0 0
        %441 = vmatprep.subr.bf16.mxu0 0
        %442 = vmatpush1.bf16.xpose.msra.mxu0 0
        %443 = vmatprep.subr.bf16.mxu0 0
        %444 = vmatpush1.bf16.xpose.msra.mxu0 0
        %445 = vmatprep.subr.bf16.mxu0 0
        %446 = vmatpush1.bf16.xpose.msra.mxu0 0
        %447 = vmatprep.subr.bf16.mxu0 0
        %448 = vmatpush1.bf16.xpose.msra.mxu0 0
        %449 = vmatprep.subr.bf16.mxu0 0
        %450 = vmatpush1.bf16.xpose.msra.mxu0 0
        %451 = vmatprep.subr.bf16.mxu0 0
        %452 = vmatpush1.bf16.xpose.msra.mxu0 0
        %453 = vmatprep.subr.bf16.mxu0 0
        %454 = vmatpush1.bf16.xpose.msra.mxu0 0
        %455 = vmatprep.subr.bf16.mxu0 0
        %456 = vmatpush1.bf16.xpose.msra.mxu0 0
        %457 = vmatprep.subr.bf16.mxu0 0
        %458 = vmatpush1.bf16.xpose.msra.mxu0 0
        %459 = vmatprep.subr.bf16.mxu0 0
        %460 = vmatpush1.bf16.xpose.msra.mxu0 0
        %461 = vmatprep.mubr.bf16.mxu0 0
        %462 = vmatmul.mubr.bf16.gmra.mrb[0].mxu0 %v424
        %v463 = vpop.f32.mrb[0].mxu0
        %v464 = vadd.f32 0.0, %v463
        %v465 = vpop.f32.mrb[0].mxu0
        %v466 = vpop.f32.mrb[0].mxu0
        %v467 = vpop.f32.mrb[0].mxu0
        %468 = vdwg.mxu0
        %v469 = vmul.f32 %v464, 0.17677669
        %v470 = vsel %vm422, %v469, -inf
        %471 = vmax.xlane.f32.xlu0 %v470
        %v472 = vpop.xlane.xlu0 %471
        %v473 = vsub.f32 %v469, %v472
        %v474 = vmul.f32 %v473, 1.442695
        %v475 = vpow.pop %v474
        %v476 = vsel %vm422, %v475, 0.0
        %477 = vadd.xlane.f32.xlu0 %v476
        %v478 = vpop.xlane.xlu0 %477
        %v479 = vrcp.pop %v478
        %v480 = vmul.f32 %v475, %v479
        %v481 = vpack.c.bf16 %v480, %v480
        %482 = vrot.lane.b32.xlu0 %v418, 64
        %v483 = vpop.permute.xlu0 %482
        %v485 = vsel %vm422, %v481, 0
        %vm487 = vcmask 1043456
        %v489 = vsel %vm487, %v483, 0
        %491 = vmatprep.subr.bf16.mxu0 0
        %492 = vmatpush1.bf16.msra.mxu0 %v489
        %493 = vmatprep.subr.bf16.mxu0 0
        %494 = vmatpush1.bf16.msra.mxu0 0
        %495 = vmatprep.subr.bf16.mxu0 0
        %496 = vmatpush1.bf16.msra.mxu0 0
        %497 = vmatprep.subr.bf16.mxu0 0
        %498 = vmatpush1.bf16.msra.mxu0 0
        %499 = vmatprep.subr.bf16.mxu0 0
        %500 = vmatpush1.bf16.msra.mxu0 0
        %501 = vmatprep.subr.bf16.mxu0 0
        %502 = vmatpush1.bf16.msra.mxu0 0
        %503 = vmatprep.subr.bf16.mxu0 0
        %504 = vmatpush1.bf16.msra.mxu0 0
        %505 = vmatprep.subr.bf16.mxu0 0
        %506 = vmatpush1.bf16.msra.mxu0 0
        %507 = vmatprep.subr.bf16.mxu0 0
        %508 = vmatpush1.bf16.msra.mxu0 0
        %509 = vmatprep.subr.bf16.mxu0 0
        %510 = vmatpush1.bf16.msra.mxu0 0
        %511 = vmatprep.subr.bf16.mxu0 0
        %512 = vmatpush1.bf16.msra.mxu0 0
        %513 = vmatprep.subr.bf16.mxu0 0
        %514 = vmatpush1.bf16.msra.mxu0 0
        %515 = vmatprep.subr.bf16.mxu0 0
        %516 = vmatpush1.bf16.msra.mxu0 0
        %517 = vmatprep.subr.bf16.mxu0 0
        %518 = vmatpush1.bf16.msra.mxu0 0
        %519 = vmatprep.subr.bf16.mxu0 0
        %520 = vmatpush1.bf16.msra.mxu0 0
        %521 = vmatprep.subr.bf16.mxu0 0
        %522 = vmatpush1.bf16.msra.mxu0 0
        %523 = vmatprep.mubr.bf16.mxu0 0
        %524 = vmatmul.mubr.bf16.gmra.mrb[0].mxu0 %v485
        %v525 = vpop.f32.mrb[0].mxu0
        %v526 = vadd.f32 0.0, %v525
        %v527 = vpop.f32.mrb[0].mxu0
        %v528 = vpop.f32.mrb[0].mxu0
        %v529 = vpop.f32.mrb[0].mxu0
        %530 = vdwg.mxu0
        %531 = vst.msk [vmem:[#allocation2] sm:$0xff] %vm422, %v526
        %532 = vrot.lane.b32.xlu0 %v418, 120
        %v533 = vpop.permute.xlu0 %532
        %534 = vrot.lane.b32.xlu0 %v418, 88
        %v535 = vpop.permute.xlu0 %534
        %v537 = vsel %vm422, %v533, 0
        %v540 = vsel %vm422, %v535, 0
        %542 = vmatprep.subr.bf16.mxu0 0
        %543 = vmatpush1.bf16.xpose.msra.mxu0 %v540
        %544 = vmatprep.subr.bf16.mxu0 0
        %545 = vmatpush1.bf16.xpose.msra.mxu0 0
        %546 = vmatprep.subr.bf16.mxu0 0
        %547 = vmatpush1.bf16.xpose.msra.mxu0 0
        %548 = vmatprep.subr.bf16.mxu0 0
        %549 = vmatpush1.bf16.xpose.msra.mxu0 0
        %550 = vmatprep.subr.bf16.mxu0 0
        %551 = vmatpush1.bf16.xpose.msra.mxu0 0
        %552 = vmatprep.subr.bf16.mxu0 0
        %553 = vmatpush1.bf16.xpose.msra.mxu0 0
        %554 = vmatprep.subr.bf16.mxu0 0
        %555 = vmatpush1.bf16.xpose.msra.mxu0 0
        %556 = vmatprep.subr.bf16.mxu0 0
        %557 = vmatpush1.bf16.xpose.msra.mxu0 0
        %558 = vmatprep.subr.bf16.mxu0 0
        %559 = vmatpush1.bf16.xpose.msra.mxu0 0
        %560 = vmatprep.subr.bf16.mxu0 0
        %561 = vmatpush1.bf16.xpose.msra.mxu0 0
        %562 = vmatprep.subr.bf16.mxu0 0
        %563 = vmatpush1.bf16.xpose.msra.mxu0 0
        %564 = vmatprep.subr.bf16.mxu0 0
        %565 = vmatpush1.bf16.xpose.msra.mxu0 0
        %566 = vmatprep.subr.bf16.mxu0 0
        %567 = vmatpush1.bf16.xpose.msra.mxu0 0
        %568 = vmatprep.subr.bf16.mxu0 0
        %569 = vmatpush1.bf16.xpose.msra.mxu0 0
        %570 = vmatprep.subr.bf16.mxu0 0
        %571 = vmatpush1.bf16.xpose.msra.mxu0 0
        %572 = vmatprep.subr.bf16.mxu0 0
        %573 = vmatpush1.bf16.xpose.msra.mxu0 0
        %574 = vmatprep.mubr.bf16.mxu0 0
        %575 = vmatmul.mubr.bf16.gmra.mrb[0].mxu0 %v537
        %v576 = vpop.f32.mrb[0].mxu0
        %v577 = vadd.f32 0.0, %v576
        %v578 = vpop.f32.mrb[0].mxu0
        %v579 = vpop.f32.mrb[0].mxu0
        %v580 = vpop.f32.mrb[0].mxu0
        %581 = vdwg.mxu0
        %v582 = vmul.f32 %v577, 0.17677669
        %v583 = vsel %vm422, %v582, -inf
        %584 = vmax.xlane.f32.xlu0 %v583
        %v585 = vpop.xlane.xlu0 %584
        %v586 = vsub.f32 %v582, %v585
        %v587 = vmul.f32 %v586, 1.442695
        %v588 = vpow.pop %v587
        %v589 = vsel %vm422, %v588, 0.0
        %590 = vadd.xlane.f32.xlu0 %v589
        %v591 = vpop.xlane.xlu0 %590
        %v592 = vrcp.pop %v591
        %v593 = vmul.f32 %v588, %v592
        %v594 = vpack.c.bf16 %v593, %v593
        %595 = vrot.lane.b32.xlu0 %v418, 56
        %v596 = vpop.permute.xlu0 %595
        %v598 = vsel %vm422, %v594, 0
        %v601 = vsel %vm487, %v596, 0
        %603 = vmatprep.subr.bf16.mxu0 0
        %604 = vmatpush1.bf16.msra.mxu0 %v601
        %605 = vmatprep.subr.bf16.mxu0 0
        %606 = vmatpush1.bf16.msra.mxu0 0
        %607 = vmatprep.subr.bf16.mxu0 0
        %608 = vmatpush1.bf16.msra.mxu0 0
        %609 = vmatprep.subr.bf16.mxu0 0
        %610 = vmatpush1.bf16.msra.mxu0 0
        %611 = vmatprep.subr.bf16.mxu0 0
        %612 = vmatpush1.bf16.msra.mxu0 0
        %613 = vmatprep.subr.bf16.mxu0 0
        %614 = vmatpush1.bf16.msra.mxu0 0
        %615 = vmatprep.subr.bf16.mxu0 0
        %616 = vmatpush1.bf16.msra.mxu0 0
        %617 = vmatprep.subr.bf16.mxu0 0
        %618 = vmatpush1.bf16.msra.mxu0 0
        %619 = vmatprep.subr.bf16.mxu0 0
        %620 = vmatpush1.bf16.msra.mxu0 0
        %621 = vmatprep.subr.bf16.mxu0 0
        %622 = vmatpush1.bf16.msra.mxu0 0
        %623 = vmatprep.subr.bf16.mxu0 0
        %624 = vmatpush1.bf16.msra.mxu0 0
        %625 = vmatprep.subr.bf16.mxu0 0
        %626 = vmatpush1.bf16.msra.mxu0 0
        %627 = vmatprep.subr.bf16.mxu0 0
        %628 = vmatpush1.bf16.msra.mxu0 0
        %629 = vmatprep.subr.bf16.mxu0 0
        %630 = vmatpush1.bf16.msra.mxu0 0
        %631 = vmatprep.subr.bf16.mxu0 0
        %632 = vmatpush1.bf16.msra.mxu0 0
        %633 = vmatprep.subr.bf16.mxu0 0
        %634 = vmatpush1.bf16.msra.mxu0 0
        %635 = vmatprep.mubr.bf16.mxu0 0
        %636 = vmatmul.mubr.bf16.gmra.mrb[0].mxu0 %v598
        %v637 = vpop.f32.mrb[0].mxu0
        %v638 = vadd.f32 0.0, %v637
        %v639 = vpop.f32.mrb[0].mxu0
        %v640 = vpop.f32.mrb[0].mxu0
        %v641 = vpop.f32.mrb[0].mxu0
        %642 = vdwg.mxu0
        %644 = vrot.lane.b32.xlu0 %v638, 8
        %v645 = vpop.permute.xlu0 %644
        %vm647 = vcmask 130112
        %648 = vst.msk [vmem:[#allocation2] sm:$0xff] %vm647, %v645
        %649 = vrot.lane.b32.xlu0 %v418, 112
        %v650 = vpop.permute.xlu0 %649
        %651 = vrot.lane.b32.xlu0 %v418, 80
        %v652 = vpop.permute.xlu0 %651
        %v654 = vsel %vm422, %v650, 0
        %v657 = vsel %vm422, %v652, 0
        %659 = vmatprep.subr.bf16.mxu0 0
        %660 = vmatpush1.bf16.xpose.msra.mxu0 %v657
        %661 = vmatprep.subr.bf16.mxu0 0
        %662 = vmatpush1.bf16.xpose.msra.mxu0 0
        %663 = vmatprep.subr.bf16.mxu0 0
        %664 = vmatpush1.bf16.xpose.msra.mxu0 0
        %665 = vmatprep.subr.bf16.mxu0 0
        %666 = vmatpush1.bf16.xpose.msra.mxu0 0
        %667 = vmatprep.subr.bf16.mxu0 0
        %668 = vmatpush1.bf16.xpose.msra.mxu0 0
        %669 = vmatprep.subr.bf16.mxu0 0
        %670 = vmatpush1.bf16.xpose.msra.mxu0 0
        %671 = vmatprep.subr.bf16.mxu0 0
        %672 = vmatpush1.bf16.xpose.msra.mxu0 0
        %673 = vmatprep.subr.bf16.mxu0 0
        %674 = vmatpush1.bf16.xpose.msra.mxu0 0
        %675 = vmatprep.subr.bf16.mxu0 0
        %676 = vmatpush1.bf16.xpose.msra.mxu0 0
        %677 = vmatprep.subr.bf16.mxu0 0
        %678 = vmatpush1.bf16.xpose.msra.mxu0 0
        %679 = vmatprep.subr.bf16.mxu0 0
        %680 = vmatpush1.bf16.xpose.msra.mxu0 0
        %681 = vmatprep.subr.bf16.mxu0 0
        %682 = vmatpush1.bf16.xpose.msra.mxu0 0
        %683 = vmatprep.subr.bf16.mxu0 0
        %684 = vmatpush1.bf16.xpose.msra.mxu0 0
        %685 = vmatprep.subr.bf16.mxu0 0
        %686 = vmatpush1.bf16.xpose.msra.mxu0 0
        %687 = vmatprep.subr.bf16.mxu0 0
        %688 = vmatpush1.bf16.xpose.msra.mxu0 0
        %689 = vmatprep.subr.bf16.mxu0 0
        %690 = vmatpush1.bf16.xpose.msra.mxu0 0
        %691 = vmatprep.mubr.bf16.mxu0 0
        %692 = vmatmul.mubr.bf16.gmra.mrb[0].mxu0 %v654
        %v693 = vpop.f32.mrb[0].mxu0
        %v694 = vadd.f32 0.0, %v693
        %v695 = vpop.f32.mrb[0].mxu0
        %v696 = vpop.f32.mrb[0].mxu0
        %v697 = vpop.f32.mrb[0].mxu0
        %698 = vdwg.mxu0
        %v699 = vmul.f32 %v694, 0.17677669
        %v700 = vsel %vm422, %v699, -inf
        %701 = vmax.xlane.f32.xlu0 %v700
        %v702 = vpop.xlane.xlu0 %701
        %v703 = vsub.f32 %v699, %v702
        %v704 = vmul.f32 %v703, 1.442695
        %v705 = vpow.pop %v704
        %v706 = vsel %vm422, %v705, 0.0
        %707 = vadd.xlane.f32.xlu0 %v706
        %v708 = vpop.xlane.xlu0 %707
        %v709 = vrcp.pop %v708
        %v710 = vmul.f32 %v705, %v709
        %v711 = vpack.c.bf16 %v710, %v710
        %712 = vrot.lane.b32.xlu0 %v418, 48
        %v713 = vpop.permute.xlu0 %712
        %v715 = vsel %vm422, %v711, 0
        %v718 = vsel %vm487, %v713, 0
        %720 = vmatprep.subr.bf16.mxu0 0
        %721 = vmatpush1.bf16.msra.mxu0 %v718
        %722 = vmatprep.subr.bf16.mxu0 0
        %723 = vmatpush1.bf16.msra.mxu0 0
        %724 = vmatprep.subr.bf16.mxu0 0
        %725 = vmatpush1.bf16.msra.mxu0 0
        %726 = vmatprep.subr.bf16.mxu0 0
        %727 = vmatpush1.bf16.msra.mxu0 0
        %728 = vmatprep.subr.bf16.mxu0 0
        %729 = vmatpush1.bf16.msra.mxu0 0
        %730 = vmatprep.subr.bf16.mxu0 0
        %731 = vmatpush1.bf16.msra.mxu0 0
        %732 = vmatprep.subr.bf16.mxu0 0
        %733 = vmatpush1.bf16.msra.mxu0 0
        %734 = vmatprep.subr.bf16.mxu0 0
        %735 = vmatpush1.bf16.msra.mxu0 0
        %736 = vmatprep.subr.bf16.mxu0 0
        %737 = vmatpush1.bf16.msra.mxu0 0
        %738 = vmatprep.subr.bf16.mxu0 0
        %739 = vmatpush1.bf16.msra.mxu0 0
        %740 = vmatprep.subr.bf16.mxu0 0
        %741 = vmatpush1.bf16.msra.mxu0 0
        %742 = vmatprep.subr.bf16.mxu0 0
        %743 = vmatpush1.bf16.msra.mxu0 0
        %744 = vmatprep.subr.bf16.mxu0 0
        %745 = vmatpush1.bf16.msra.mxu0 0
        %746 = vmatprep.subr.bf16.mxu0 0
        %747 = vmatpush1.bf16.msra.mxu0 0
        %748 = vmatprep.subr.bf16.mxu0 0
        %749 = vmatpush1.bf16.msra.mxu0 0
        %750 = vmatprep.subr.bf16.mxu0 0
        %751 = vmatpush1.bf16.msra.mxu0 0
        %752 = vmatprep.mubr.bf16.mxu0 0
        %753 = vmatmul.mubr.bf16.gmra.mrb[0].mxu0 %v715
        %v754 = vpop.f32.mrb[0].mxu0
        %v755 = vadd.f32 0.0, %v754
        %v756 = vpop.f32.mrb[0].mxu0
        %v757 = vpop.f32.mrb[0].mxu0
        %v758 = vpop.f32.mrb[0].mxu0
        %759 = vdwg.mxu0
        %761 = vrot.lane.b32.xlu0 %v755, 16
        %v762 = vpop.permute.xlu0 %761
        %vm764 = vcmask 195712
        %765 = vst.msk [vmem:[#allocation2] sm:$0xff] %vm764, %v762
        %766 = vrot.lane.b32.xlu0 %v418, 104
        %v767 = vpop.permute.xlu0 %766
        %768 = vrot.lane.b32.xlu0 %v418, 72
        %v769 = vpop.permute.xlu0 %768
        %v771 = vsel %vm422, %v767, 0
        %v774 = vsel %vm422, %v769, 0
        %776 = vmatprep.subr.bf16.mxu0 0
        %777 = vmatpush1.bf16.xpose.msra.mxu0 %v774
        %778 = vmatprep.subr.bf16.mxu0 0
        %779 = vmatpush1.bf16.xpose.msra.mxu0 0
        %780 = vmatprep.subr.bf16.mxu0 0
        %781 = vmatpush1.bf16.xpose.msra.mxu0 0
        %782 = vmatprep.subr.bf16.mxu0 0
        %783 = vmatpush1.bf16.xpose.msra.mxu0 0
        %784 = vmatprep.subr.bf16.mxu0 0
        %785 = vmatpush1.bf16.xpose.msra.mxu0 0
        %786 = vmatprep.subr.bf16.mxu0 0
        %787 = vmatpush1.bf16.xpose.msra.mxu0 0
        %788 = vmatprep.subr.bf16.mxu0 0
        %789 = vmatpush1.bf16.xpose.msra.mxu0 0
        %790 = vmatprep.subr.bf16.mxu0 0
        %791 = vmatpush1.bf16.xpose.msra.mxu0 0
        %792 = vmatprep.subr.bf16.mxu0 0
        %793 = vmatpush1.bf16.xpose.msra.mxu0 0
        %794 = vmatprep.subr.bf16.mxu0 0
        %795 = vmatpush1.bf16.xpose.msra.mxu0 0
        %796 = vmatprep.subr.bf16.mxu0 0
        %797 = vmatpush1.bf16.xpose.msra.mxu0 0
        %798 = vmatprep.subr.bf16.mxu0 0
        %799 = vmatpush1.bf16.xpose.msra.mxu0 0
        %800 = vmatprep.subr.bf16.mxu0 0
        %801 = vmatpush1.bf16.xpose.msra.mxu0 0
        %802 = vmatprep.subr.bf16.mxu0 0
        %803 = vmatpush1.bf16.xpose.msra.mxu0 0
        %804 = vmatprep.subr.bf16.mxu0 0
        %805 = vmatpush1.bf16.xpose.msra.mxu0 0
        %806 = vmatprep.subr.bf16.mxu0 0
        %807 = vmatpush1.bf16.xpose.msra.mxu0 0
        %808 = vmatprep.mubr.bf16.mxu0 0
        %809 = vmatmul.mubr.bf16.gmra.mrb[0].mxu0 %v771
        %v810 = vpop.f32.mrb[0].mxu0
        %v811 = vadd.f32 0.0, %v810
        %v812 = vpop.f32.mrb[0].mxu0
        %v813 = vpop.f32.mrb[0].mxu0
        %v814 = vpop.f32.mrb[0].mxu0
        %815 = vdwg.mxu0
        %v816 = vmul.f32 %v811, 0.17677669
        %v817 = vsel %vm422, %v816, -inf
        %818 = vmax.xlane.f32.xlu0 %v817
        %v819 = vpop.xlane.xlu0 %818
        %v820 = vsub.f32 %v816, %v819
        %v821 = vmul.f32 %v820, 1.442695
        %v822 = vpow.pop %v821
        %v823 = vsel %vm422, %v822, 0.0
        %824 = vadd.xlane.f32.xlu0 %v823
        %v825 = vpop.xlane.xlu0 %824
        %v826 = vrcp.pop %v825
        %v827 = vmul.f32 %v822, %v826
        %v828 = vpack.c.bf16 %v827, %v827
        %829 = vrot.lane.b32.xlu0 %v418, 40
        %v830 = vpop.permute.xlu0 %829
        %v832 = vsel %vm422, %v828, 0
        %v835 = vsel %vm487, %v830, 0
        %837 = vmatprep.subr.bf16.mxu0 0
        %838 = vmatpush1.bf16.msra.mxu0 %v835
        %839 = vmatprep.subr.bf16.mxu0 0
        %840 = vmatpush1.bf16.msra.mxu0 0
        %841 = vmatprep.subr.bf16.mxu0 0
        %842 = vmatpush1.bf16.msra.mxu0 0
        %843 = vmatprep.subr.bf16.mxu0 0
        %844 = vmatpush1.bf16.msra.mxu0 0
        %845 = vmatprep.subr.bf16.mxu0 0
        %846 = vmatpush1.bf16.msra.mxu0 0
        %847 = vmatprep.subr.bf16.mxu0 0
        %848 = vmatpush1.bf16.msra.mxu0 0
        %849 = vmatprep.subr.bf16.mxu0 0
        %850 = vmatpush1.bf16.msra.mxu0 0
        %851 = vmatprep.subr.bf16.mxu0 0
        %852 = vmatpush1.bf16.msra.mxu0 0
        %853 = vmatprep.subr.bf16.mxu0 0
        %854 = vmatpush1.bf16.msra.mxu0 0
        %855 = vmatprep.subr.bf16.mxu0 0
        %856 = vmatpush1.bf16.msra.mxu0 0
        %857 = vmatprep.subr.bf16.mxu0 0
        %858 = vmatpush1.bf16.msra.mxu0 0
        %859 = vmatprep.subr.bf16.mxu0 0
        %860 = vmatpush1.bf16.msra.mxu0 0
        %861 = vmatprep.subr.bf16.mxu0 0
        %862 = vmatpush1.bf16.msra.mxu0 0
        %863 = vmatprep.subr.bf16.mxu0 0
        %864 = vmatpush1.bf16.msra.mxu0 0
        %865 = vmatprep.subr.bf16.mxu0 0
        %866 = vmatpush1.bf16.msra.mxu0 0
        %867 = vmatprep.subr.bf16.mxu0 0
        %868 = vmatpush1.bf16.msra.mxu0 0
        %869 = vmatprep.mubr.bf16.mxu0 0
        %870 = vmatmul.mubr.bf16.gmra.mrb[0].mxu0 %v832
        %v871 = vpop.f32.mrb[0].mxu0
        %v872 = vadd.f32 0.0, %v871
        %v873 = vpop.f32.mrb[0].mxu0
        %v874 = vpop.f32.mrb[0].mxu0
        %v875 = vpop.f32.mrb[0].mxu0
        %876 = vdwg.mxu0
        %878 = vrot.lane.b32.xlu0 %v872, 24
        %v879 = vpop.permute.xlu0 %878
        %vm881 = vcmask 261312
        %882 = vst.msk [vmem:[#allocation2] sm:$0xff] %vm881, %v879
        %v883 = vld [vmem:[#allocation2] sm:$0xff]
        %v884 = vadd.f32 %v356, %v883
        %v885 = vld [vmem:[%s6] sm:$0x1]
        %v886 = vld [vmem:[%s7] sm:$0x1]
        %v887 = vsel %vm374, %v884, 0.0
        %888 = vadd.xlane.f32.xlu0 %v887
        %v889 = vpop.xlane.xlu0 %888
        %v890 = vmul.f32 %v889, 0.03125
        %v891 = vsub.f32 %v884, %v890
        %v892 = vmul.f32 %v891, %v891
        %v893 = vsel %vm374, %v892, 0.0
        %894 = vadd.xlane.f32.xlu0 %v893
        %v895 = vpop.xlane.xlu0 %894
        %v896 = vmul.f32 %v895, 0.032258064
        %v897 = vrsqrt.pop %v896
        %v898 = vmul.f32 %v896, %v897
        %vm899 = vcmp.eq.f32.partialorder %v896, inf
        %v900 = vsel %vm899, %v896, %v898
        %vm901 = vcmp.eq.f32.partialorder %v896, 0.0
        %v902 = vand.u32 %v896, 2147483648
        %v903 = vsel %vm901, %v902, %v900
        %v904 = vadd.f32 %v903, 1e-06
        %v905 = vrcp.pop %v904
        %v906 = vmul.f32 %v891, %v905
        %v908 = vlaneseq
        %v909 = vshrl.u32 %v908, 7
        %v910 = vsub.s32 0, %v909
        %v911 = vrot.slane %v885, %v910
        %v913 = vmul.f32 %v906, %v911
        %v915 = vlaneseq
        %v916 = vshrl.u32 %v915, 7
        %v917 = vsub.s32 0, %v916
        %v918 = vrot.slane %v886, %v917
        %v920 = vadd.f32 %v913, %v918
        %v921 = vpack.c.bf16 %v920, %v920
        %v922 = vld [vmem:[%s2] sm:$0xf]
        %v923 = vld [vmem:[%s2 + $0x4] sm:$0xf]
        %v924 = vld [vmem:[%s2 + $0x8] sm:$0xf]
        %v925 = vld [vmem:[%s2 + $0xc] sm:$0xf]
        %v926 = vld [vmem:[%s3] sm:$0x1]
        %v928 = vlaneseq
        %v929 = vshrl.u32 %v928, 7
        %v930 = vsub.s32 0, %v929
        %v931 = vrot.slane %v926, %v930
        %v937 = vunpack.c.l.b16 %v922
        %v938 = vunpack.c.l.b16 %v923
        %v939 = vunpack.c.l.b16 %v924
        %v940 = vunpack.c.l.b16 %v925
        %v941 = vpack.c.b16 %v938, %v937
        %v942 = vpack.c.b16 %v940, %v939
        %v946 = vsel %vm374, %v921, 0
        %948 = vmatprep.subr.bf16.mxu0 0
        %949 = vmatpush1.bf16.msra.mxu0 %v941
        %950 = vmatprep.subr.bf16.mxu0 0
        %951 = vmatpush1.bf16.msra.mxu0 %v942
        %952 = vmatprep.subr.bf16.mxu0 0
        %953 = vmatpush1.bf16.msra.mxu0 0
        %954 = vmatprep.subr.bf16.mxu0 0
        %955 = vmatpush1.bf16.msra.mxu0 0
        %956 = vmatprep.subr.bf16.mxu0 0
        %957 = vmatpush1.bf16.msra.mxu0 0
        %958 = vmatprep.subr.bf16.mxu0 0
        %959 = vmatpush1.bf16.msra.mxu0 0
        %960 = vmatprep.subr.bf16.mxu0 0
        %961 = vmatpush1.bf16.msra.mxu0 0
        %962 = vmatprep.subr.bf16.mxu0 0
        %963 = vmatpush1.bf16.msra.mxu0 0
        %964 = vmatprep.subr.bf16.mxu0 0
        %965 = vmatpush1.bf16.msra.mxu0 0
        %966 = vmatprep.subr.bf16.mxu0 0
        %967 = vmatpush1.bf16.msra.mxu0 0
        %968 = vmatprep.subr.bf16.mxu0 0
        %969 = vmatpush1.bf16.msra.mxu0 0
        %970 = vmatprep.subr.bf16.mxu0 0
        %971 = vmatpush1.bf16.msra.mxu0 0
        %972 = vmatprep.subr.bf16.mxu0 0
        %973 = vmatpush1.bf16.msra.mxu0 0
        %974 = vmatprep.subr.bf16.mxu0 0
        %975 = vmatpush1.bf16.msra.mxu0 0
        %976 = vmatprep.subr.bf16.mxu0 0
        %977 = vmatpush1.bf16.msra.mxu0 0
        %978 = vmatprep.subr.bf16.mxu0 0
        %979 = vmatpush1.bf16.msra.mxu0 0
        %980 = vmatprep.mubr.bf16.mxu0 0
        %981 = vmatmul.mubr.bf16.gmra.mrb[0].mxu0 %v946
        %v982 = vpop.f32.mrb[0].mxu0
        %v983 = vadd.f32 %v931, %v982
        %v984 = vpop.f32.mrb[0].mxu0
        %v985 = vpop.f32.mrb[0].mxu0
        %v986 = vpop.f32.mrb[0].mxu0
        %987 = vdwg.mxu0
        %v988 = vmax.f32 %v983, 0.0
        %v989 = vpack.c.bf16 %v988, %v988
        %v990 = vld [vmem:[%s4] sm:$0xf]
        %v991 = vld [vmem:[%s4 + $0x4] sm:$0xf]
        %v992 = vld [vmem:[%s4 + $0x8] sm:$0xf]
        %v993 = vld [vmem:[%s4 + $0xc] sm:$0xf]
        %v994 = vld [vmem:[%s4 + $0x10] sm:$0xf]
        %v995 = vld [vmem:[%s4 + $0x14] sm:$0xf]
        %v996 = vld [vmem:[%s4 + $0x18] sm:$0xf]
        %v997 = vld [vmem:[%s4 + $0x1c] sm:$0xf]
        %v998 = vld [vmem:[%s5] sm:$0x1]
        %v1000 = vlaneseq
        %v1001 = vshrl.u32 %v1000, 7
        %v1002 = vsub.s32 0, %v1001
        %v1003 = vrot.slane %v998, %v1002
        %v1013 = vunpack.c.l.b16 %v990
        %v1014 = vunpack.c.l.b16 %v991
        %v1015 = vunpack.c.l.b16 %v992
        %v1016 = vunpack.c.l.b16 %v993
        %v1017 = vunpack.c.l.b16 %v994
        %v1018 = vunpack.c.l.b16 %v995
        %v1019 = vunpack.c.l.b16 %v996
        %v1020 = vunpack.c.l.b16 %v997
        %v1021 = vpack.c.b16 %v1014, %v1013
        %v1022 = vpack.c.b16 %v1016, %v1015
        %v1023 = vpack.c.b16 %v1018, %v1017
        %v1024 = vpack.c.b16 %v1020, %v1019
        %vm1029 = vcmask 523264
        %v1031 = vsel %vm1029, %v989, 0
        %1033 = vmatprep.subr.bf16.mxu0 0
        %1034 = vmatpush1.bf16.msra.mxu0 %v1021
        %1035 = vmatprep.subr.bf16.mxu0 0
        %1036 = vmatpush1.bf16.msra.mxu0 %v1022
        %1037 = vmatprep.subr.bf16.mxu0 0
        %1038 = vmatpush1.bf16.msra.mxu0 %v1023
        %1039 = vmatprep.subr.bf16.mxu0 0
        %1040 = vmatpush1.bf16.msra.mxu0 %v1024
        %1041 = vmatprep.subr.bf16.mxu0 0
        %1042 = vmatpush1.bf16.msra.mxu0 0
        %1043 = vmatprep.subr.bf16.mxu0 0
        %1044 = vmatpush1.bf16.msra.mxu0 0
        %1045 = vmatprep.subr.bf16.mxu0 0
        %1046 = vmatpush1.bf16.msra.mxu0 0
        %1047 = vmatprep.subr.bf16.mxu0 0
        %1048 = vmatpush1.bf16.msra.mxu0 0
        %1049 = vmatprep.subr.bf16.mxu0 0
        %1050 = vmatpush1.bf16.msra.mxu0 0
        %1051 = vmatprep.subr.bf16.mxu0 0
        %1052 = vmatpush1.bf16.msra.mxu0 0
        %1053 = vmatprep.subr.bf16.mxu0 0
        %1054 = vmatpush1.bf16.msra.mxu0 0
        %1055 = vmatprep.subr.bf16.mxu0 0
        %1056 = vmatpush1.bf16.msra.mxu0 0
        %1057 = vmatprep.subr.bf16.mxu0 0
        %1058 = vmatpush1.bf16.msra.mxu0 0
        %1059 = vmatprep.subr.bf16.mxu0 0
        %1060 = vmatpush1.bf16.msra.mxu0 0
        %1061 = vmatprep.subr.bf16.mxu0 0
        %1062 = vmatpush1.bf16.msra.mxu0 0
        %1063 = vmatprep.subr.bf16.mxu0 0
        %1064 = vmatpush1.bf16.msra.mxu0 0
        %1065 = vmatprep.mubr.bf16.mxu0 0
        %1066 = vmatmul.mubr.bf16.gmra.mrb[0].mxu0 %v1031
        %v1067 = vpop.f32.mrb[0].mxu0
        %v1068 = vadd.f32 %v1003, %v1067
        %v1069 = vpop.f32.mrb[0].mxu0
        %v1070 = vpop.f32.mrb[0].mxu0
        %v1071 = vpop.f32.mrb[0].mxu0
        %1072 = vdwg.mxu0
        %v1073 = vadd.f32 %v920, %v1068
        %v1074 = vld [vmem:[%s8] sm:$0x1]
        %v1075 = vld [vmem:[%s9] sm:$0x1]
        %v1076 = vsel %vm374, %v1073, 0.0
        %1077 = vadd.xlane.f32.xlu0 %v1076
        %v1078 = vpop.xlane.xlu0 %1077
        %v1079 = vmul.f32 %v1078, 0.03125
        %v1080 = vsub.f32 %v1073, %v1079
        %v1081 = vmul.f32 %v1080, %v1080
        %v1082 = vsel %vm374, %v1081, 0.0
        %1083 = vadd.xlane.f32.xlu0 %v1082
        %v1084 = vpop.xlane.xlu0 %1083
        %v1085 = vmul.f32 %v1084, 0.032258064
        %v1086 = vrsqrt.pop %v1085
        %v1087 = vmul.f32 %v1085, %v1086
        %vm1088 = vcmp.eq.f32.partialorder %v1085, inf
        %v1089 = vsel %vm1088, %v1085, %v1087
        %vm1090 = vcmp.eq.f32.partialorder %v1085, 0.0
        %v1091 = vand.u32 %v1085, 2147483648
        %v1092 = vsel %vm1090, %v1091, %v1089
        %v1093 = vadd.f32 %v1092, 1e-06
        %v1094 = vrcp.pop %v1093
        %v1095 = vmul.f32 %v1080, %v1094
        %v1097 = vlaneseq
        %v1098 = vshrl.u32 %v1097, 7
        %v1099 = vsub.s32 0, %v1098
        %v1100 = vrot.slane %v1074, %v1099
        %v1102 = vmul.f32 %v1095, %v1100
        %v1104 = vlaneseq
        %v1105 = vshrl.u32 %v1104, 7
        %v1106 = vsub.s32 0, %v1105
        %v1107 = vrot.slane %v1075, %v1106
        %v1109 = vadd.f32 %v1102, %v1107
        %1110 = vst.msk [vmem:[%s350] sm:$0xff] %vm374, %v1109
        %s1111 = sand.u32 %s247, 1
        %s1112 = scalar_lea.sflag [#allocation4], %s1111
        %s1113 = sand.u32 %s247, 1
        %s1114 = smul.addr %s1113, 8
        %s1115 = scalar_lea.vmem [#allocation3], %s1114
        // Predicated region
        $region61: #{tpu_custom_call.1} parent=59 // pred_check
          %p1116 = pneg %p257
        $region62: #{tpu_custom_call.1} parent=59 // pred_check_branch
          %1118 = sbr.rel (%p1116) target = $region64
        $region63: #{tpu_custom_call.1} parent=59 // pred_region
          %s1120 = ssub.s32 128, 128
          %1121 = vsyncadd %s1112, %s1120
          %s1122 = smul.addr %s24, 128
          %s1123 = scalar_lea.hbm %s10, %s1122
          %s1125 = sshll.u32 %s1115, 4
          %s1126 = int_to_ptr.vmem [resolvable:$true] %s1125
          %1128 = dma.vmem_to_hbm [thread:$0]  %s1126, 128, %s1123, %s1112
        $region64: #{tpu_custom_call.1} parent=59 // pred_fallthru
          _
      $region60: #{tpu_custom_call.1} parent=5 // pred_fallthru
        _
      %p1129 = scmp.le.s32.totalorder 2, %s19
      // Predicated region
      $region65: #{tpu_custom_call.1} parent=5 // pred_check
        %p1130 = pneg %p1129
      $region66: #{tpu_custom_call.1} parent=5 // pred_check_branch
        %1132 = sbr.rel (%p1130) target = $region68
      $region67: #{tpu_custom_call.1} parent=5 // pred_region
        %s1133 = ssub.s32 %s19, 2
        // Predicated region
        $region69: #{tpu_custom_call.1} parent=67 // pred_check
          %p1134 = pneg %p263
        $region70: #{tpu_custom_call.1} parent=67 // pred_check_branch
          %1136 = sbr.rel (%p1134) target = $region72
        $region71: #{tpu_custom_call.1} parent=67 // pred_region
          %s1137 = sand.u32 %s248, 1
          %s1138 = scalar_lea.sflag [#allocation4], %s1137
          %s1139 = sand.u32 %s248, 1
          %s1140 = smul.addr %s1139, 8
          %s1141 = scalar_lea.vmem [#allocation3], %s1140
          %1142 = dma.done %s1138, 128
        $region72: #{tpu_custom_call.1} parent=67 // pred_fallthru
          _
      $region68: #{tpu_custom_call.1} parent=5 // pred_fallthru
        _
    $region6: #{tpu_custom_call.1} parent=1 // loop_footer
      %s23 = sadd.s32 1, %s19
    $region7: #{tpu_custom_call.1} parent=1 // loop_footer_branch
      %18 = sbr.rel target = $region3
    $region8: #{tpu_custom_call.1} parent=1 // loop_exit
      _
    %1143 = vsyncpa [#allocation4], 1
    %s1144 = scalar_lea.sflag [#allocation4], 1
    %1145 = vsyncpa %s1144, 1

</llo_original>
